<compile_context>
chip_gen: v7x
topology: tpu7x:2x2x1
jax: 0.10.0
libtpu: 0.0.40
codegen_flags: <defaults>
</compile_context>

<pallas_src>
import numpy as np
import jax
import jax.numpy as jnp
from jax import lax
from jax.experimental import pallas as pl
from jax.experimental.pallas import tpu as pltpu


def _round_up(x, m):
    return (x + m - 1) // m * m


def _cdiv(a, b):
    return -(-a // b)


def _vmem_budget_bytes():
    """Per-generation scoped-VMEM budget: ~75% of physical VMEM, clamped to [32, 100] MiB.

    -> ~96 MiB on 128 MiB parts (v5e/v6e), 48 MiB on 64 MiB parts (v7x); conservative
    48 MiB fallback if the query is unavailable.
    """
    try:
        cap = int(pltpu.get_tpu_info().vmem_capacity_bytes)
    except Exception:  # noqa: BLE001 - any failure -> safe fallback
        cap = 64 * 2 ** 20
    return int(min(100 * 2 ** 20, max(32 * 2 ** 20, cap * 3 // 4)))


def gated_conv(feat, wx, bx, wm, bm, *, tl=None, max_parallel=8,
               compute_dtype=jnp.float32):
    """Fused GatedConv: reflect-pad(1) + conv3x3 (x) + conv3x3 (mask) + x * sigmoid(mask).

    feat: (N, Cin, H, W); wx/wm: (Cout, Cin, 3, 3) torch OIHW; bx/bm: (Cout,).
    Returns (N, Cout, H, W) in feat.dtype.  `tl=None` auto-picks the spatial tile.
    """
    n, cin, h, w = feat.shape
    cout = wx.shape[0]
    out_dtype = feat.dtype
    isz = jnp.dtype(compute_dtype).itemsize
    osz = jnp.dtype(out_dtype).itemsize

    # Sublane-aligned channel padding (8 rows f32 / 16 rows bf16); padded channels are
    # zero and cropped at the end.
    sub = 8 * (4 // isz)
    cin_p = _round_up(cin, sub)
    cout_p = _round_up(cout, sub)

    hp2, wp2 = h + 2, w + 2
    p_tot = n * hp2 * wp2
    # Flattened-frame shifts of the 9 taps (dy outer, dx inner); max |shift| = wp2 + 1.
    shifts = [(dy - 1) * wp2 + (dx - 1) for dy in range(3) for dx in range(3)]
    halo = _round_up(wp2 + 1, 128)  # lane-aligned halo that covers every tap shift

    budget = _vmem_budget_bytes()

    def footprint(c):
        tw_ = c + 2 * halo
        return (2 * cin_p * tw_ * isz                # double-buffered window scratch
                + 2 * 9 * 2 * cout_p * cin_p * isz   # weight block (2 pipeline buffers)
                + 2 * cout_p * c * osz * 2           # output blocks (2 buffers)
                + 2 * cout_p * c * 4                 # f32 accumulator value
                + cin_p * c * isz                    # per-tap slice temp
                + 2 * cout_p * c * 4)                # epilogue temps

    if tl is None:
        want_two = _cdiv(p_tot, 128) >= 2            # keep >=2 grid chunks when possible
        tl = 128
        for cand in (4096, 2048, 1024, 512, 256, 128):
            if footprint(cand) * 3 // 2 > budget:
                continue
            if want_two and _cdiv(p_tot, cand) < 2:
                continue
            tl = cand
            break
    else:
        tl = max(128, _round_up(int(tl), 128))
    tw = tl + 2 * halo

    g = _cdiv(p_tot, tl)
    go = min(g, max(1, int(max_parallel)))   # "parallel" outer axis (megacore / v7x 2-TC)
    gi = _cdiv(g, go)                        # "arbitrary" inner axis (carries DMA state)
    t_tiles = go * gi                        # tail tiles are zero and cropped afterwards
    wx_lanes = t_tiles * tl + 2 * halo

    # ---- layout glue (plain XLA, one pass each): reflect pad, channels-major flatten,
    #      single zero canvas that does channel + halo lane padding in one update ----
    x = jnp.pad(feat.astype(compute_dtype), ((0, 0), (0, 0), (1, 1), (1, 1)),
                mode="reflect")
    x = jnp.transpose(x, (1, 0, 2, 3)).reshape(cin, p_tot)       # (Cin, P), spatial on lanes
    xw = jnp.zeros((cin_p, wx_lanes), compute_dtype)
    xw = lax.dynamic_update_slice(xw, x, (0, halo))              # data lives at lane offset halo

    # ---- fused weights (9, 2*Cout_pad, Cin_pad): tap-major, x-conv rows then mask rows ----
    def prep(wt):
        wt = jnp.transpose(wt, (2, 3, 0, 1)).reshape(9, cout, cin)   # [dy*3+dx, o, i]
        return jnp.pad(wt, ((0, 0), (0, cout_p - cout), (0, cin_p - cin)))

    w_cat = jnp.concatenate([prep(wx), prep(wm)], axis=1).astype(compute_dtype)
    b_cat = jnp.concatenate([jnp.pad(bx, (0, cout_p - cout)),
                             jnp.pad(bm, (0, cout_p - cout))]
                            ).astype(jnp.float32).reshape(2 * cout_p, 1)

    # ---- the fused kernel ----
    def kernel(xw_ref, w_ref, b_ref, o_ref, win_ref, sem_ref):
        i = pl.program_id(1)
        gi_n = pl.num_programs(1)
        t = pl.program_id(0) * gi_n + i
        slot = lax.rem(i, 2)

        def start_window(tile, s):
            off = pl.multiple_of(tile * tl, 128)
            pltpu.make_async_copy(xw_ref.at[:, pl.ds(off, tw)],
                                  win_ref.at[s], sem_ref.at[s]).start()

        # Prime the first tile of this core's inner chain (every core executes i == 0).
        @pl.when(i == 0)
        def _():
            start_window(t, slot)

        # Prefetch the next tile into the other buffer while we compute this one.
        @pl.when(i + 1 < gi_n)
        def _():
            start_window(t + 1, 1 - slot)

        pltpu.make_async_copy(xw_ref.at[:, pl.ds(0, tw)],
                              win_ref.at[slot], sem_ref.at[slot]).wait()

        window = win_ref[slot]                                   # (Cin_pad, TW)
        # 9 accumulating MXU dots straight off the window (no im2col scratch).
        acc = jnp.zeros((2 * cout_p, tl), jnp.float32)
        for k, s in enumerate(shifts):
            tap = window[:, halo + s: halo + s + tl]             # (Cin_pad, TL)
            acc = acc + jnp.dot(w_ref[k], tap, preferred_element_type=jnp.float32)
        # f32 bias + gating epilogue (rides the idle VPU/EUP slots).
        xh = acc[:cout_p, :] + b_ref[:cout_p, :]
        mh = acc[cout_p:, :] + b_ref[cout_p:, :]
        o_ref[...] = (xh * jax.nn.sigmoid(mh)).astype(o_ref.dtype)

    cost = pl.CostEstimate(
        flops=int(2 * (2 * cout_p) * (9 * cin_p) * t_tiles * tl),
        transcendentals=int(cout_p * t_tiles * tl),
        bytes_accessed=int(cin_p * (p_tot + t_tiles * 2 * halo) * isz
                           + w_cat.size * isz + b_cat.size * 4
                           + cout_p * t_tiles * tl * osz),
    )

    out_flat = pl.pallas_call(
        kernel,
        out_shape=jax.ShapeDtypeStruct((cout_p, t_tiles * tl), out_dtype),
        grid=(go, gi),
        in_specs=[
            pl.BlockSpec(memory_space=pl.ANY),                              # halo'd canvas (HBM)
            pl.BlockSpec((9, 2 * cout_p, cin_p), lambda o, i: (0, 0, 0)),   # resident weights
            pl.BlockSpec((2 * cout_p, 1), lambda o, i: (0, 0)),             # f32 biases
        ],
        out_specs=pl.BlockSpec((cout_p, tl), lambda o, i: (0, o * gi + i)),
        scratch_shapes=[
            pltpu.VMEM((2, cin_p, tw), compute_dtype),   # double-buffered halo'd window
            pltpu.SemaphoreType.DMA((2,)),
        ],
        compiler_params=pltpu.CompilerParams(
            dimension_semantics=("parallel", "arbitrary"),
            vmem_limit_bytes=budget,
        ),
        cost_estimate=cost,
    )(xw, w_cat, b_cat)

    # Crop: drop lane padding, keep the padded-frame interior, drop channel padding.
    out = out_flat[:, :p_tot].reshape(cout_p, n, hp2, wp2)[:cout, :, 1:1 + h, 1:1 + w]
    return jnp.transpose(out, (1, 0, 2, 3))  # (N, Cout, H, W)


def gated_conv_reference(feat, wx, bx, wm, bm):
    """Plain-JAX reference matching the PyTorch GatedConv semantics (for validation)."""
    padded = jnp.pad(feat, ((0, 0), (0, 0), (1, 1), (1, 1)), mode="reflect")
    dn = ("NCHW", "OIHW", "NCHW")
    x = lax.conv_general_dilated(padded, wx, (1, 1), "VALID",
                                 dimension_numbers=dn) + bx[None, :, None, None]
    msk = lax.conv_general_dilated(padded, wm, (1, 1), "VALID",
                                   dimension_numbers=dn) + bm[None, :, None, None]
    return x * jax.nn.sigmoid(msk)


if __name__ == "__main__":
    N, Cin, Cout, H, W = 2, 4, 4, 16, 16

    key = jax.random.PRNGKey(0)
    k1, k2, k3, k4, k5 = jax.random.split(key, 5)

    feat = jax.random.normal(k1, (N, Cin, H, W), dtype=jnp.float32)

    # PyTorch-style uniform(-1/sqrt(fan_in), +1/sqrt(fan_in)) init.
    fan_in = Cin * 3 * 3
    bound = 1.0 / np.sqrt(fan_in)
    wx = jax.random.uniform(k2, (Cout, Cin, 3, 3), jnp.float32, -bound, bound)
    bx = jax.random.uniform(k3, (Cout,), jnp.float32, -bound, bound)
    wm = jax.random.uniform(k4, (Cout, Cin, 3, 3), jnp.float32, -bound, bound)
    bm = jax.random.uniform(k5, (Cout,), jnp.float32, -bound, bound)

    ref = gated_conv_reference(feat, wx, bx, wm, bm)

    # Auto-tiled path (picks TL so there are >=2 parallel chunks).
    out = jax.block_until_ready(gated_conv(feat, wx, bx, wm, bm))
    np.testing.assert_allclose(np.asarray(out), np.asarray(ref), atol=1e-4, rtol=1e-4)

    # Multi-tile path with an inner (arbitrary) axis >= 2: exercises the double-buffered
    # window prefetch, slot toggling, and the zero-padded tail tiles.
    feat2 = jax.random.normal(k1, (2, Cin, 24, 24), dtype=jnp.float32)
    ref2 = gated_conv_reference(feat2, wx, bx, wm, bm)
    out2 = jax.block_until_ready(gated_conv(feat2, wx, bx, wm, bm, tl=128))
    np.testing.assert_allclose(np.asarray(out2), np.asarray(ref2), atol=1e-4, rtol=1e-4)

    # bf16 MXU feeding (recommended on v5e/v6e/v7x); accumulation, bias and gate stay f32.
    out_bf16 = jax.block_until_ready(
        gated_conv(feat, wx, bx, wm, bm, compute_dtype=jnp.bfloat16))
    np.testing.assert_allclose(np.asarray(out_bf16), np.asarray(ref), atol=1e-1, rtol=1e-1)

    print("KERNEL_OK")
</pallas_src>

<mosaic_0001>
module attributes {stable_mosaic.version = 11 : i64} {
  func.func @kernel(%arg0: i32, %arg1: i32, %arg2: memref<8x1280xf32, #tpu.memory_space<any>>, %arg3: memref<9x16x8xf32, #tpu.memory_space<vmem>>, %arg4: memref<16x1xf32, #tpu.memory_space<vmem>>, %arg5: memref<8x512xf32, #tpu.memory_space<vmem>>, %arg6: memref<2x8x768xf32, #tpu.memory_space<vmem>>, %arg7: memref<2x!tpu.dma_semaphore, #tpu.memory_space<semaphore_mem>>) attributes {dimension_semantics = [#tpu.dimension_semantics<parallel>, #tpu.dimension_semantics<arbitrary>], iteration_bounds = array<i64: 2, 1>, scalar_prefetch = 0 : i64, scratch_operands = 2 : i64, tpu.core_type = #tpu.core_type<tc>, window_params = [{}, {pipeline_mode = #tpu.pipeline_mode<synchronous>, transform_indices = @transform_1, window_bounds = array<i64: 9, 16, 8>}, {pipeline_mode = #tpu.pipeline_mode<synchronous>, transform_indices = @transform_2, window_bounds = array<i64: 16, 1>}, {transform_indices = @transform_3, window_bounds = array<i64: 8, 512>}]} {
    %c1_i32 = arith.constant 1 : i32
    %0 = arith.muli %arg0, %c1_i32 : i32
    %1 = arith.addi %0, %arg1 : i32
    %c2_i32 = arith.constant 2 : i32
    %2 = arith.remsi %arg1, %c2_i32 : i32
    %c0_i32 = arith.constant 0 : i32
    %3 = arith.cmpi eq, %arg1, %c0_i32 : i32
    %4 = arith.extui %3 : i1 to i32
    %c0_i32_0 = arith.constant 0 : i32
    %5 = arith.cmpi ne, %4, %c0_i32_0 : i32
    scf.if %5 {
      %c512_i32 = arith.constant 512 : i32
      %79 = arith.muli %1, %c512_i32 : i32
      %80 = tpu.assume_multiple %79, 128 : i32
      %c0_i32_44 = arith.constant 0 : i32
      %81 = tpu.memref_slice %arg2[%c0_i32_44, %80] : memref<8x1280xf32, #tpu.memory_space<any>> -> memref<8x768xf32, #tpu.memory_space<any>>
      %c0_i32_45 = arith.constant 0 : i32
      %c0_i32_46 = arith.constant 0 : i32
      %82 = tpu.memref_slice %arg6[%2, %c0_i32_45, %c0_i32_46] : memref<2x8x768xf32, #tpu.memory_space<vmem>> -> memref<1x8x768xf32, #tpu.memory_space<vmem>>
      %83 = tpu.memref_squeeze %82 : memref<1x8x768xf32, #tpu.memory_space<vmem>> -> memref<8x768xf32, #tpu.memory_space<vmem>>
      %84 = tpu.memref_slice %arg7[%2] : memref<2x!tpu.dma_semaphore, #tpu.memory_space<semaphore_mem>> -> memref<1x!tpu.dma_semaphore, #tpu.memory_space<semaphore_mem>>
      %85 = tpu.memref_squeeze %84 : memref<1x!tpu.dma_semaphore, #tpu.memory_space<semaphore_mem>> -> memref<!tpu.dma_semaphore, #tpu.memory_space<semaphore_mem>>
      tpu.enqueue_dma source(%81 : memref<8x768xf32, #tpu.memory_space<any>>) target(%83 : memref<8x768xf32, #tpu.memory_space<vmem>>) target_semaphore(%85 : memref<!tpu.dma_semaphore, #tpu.memory_space<semaphore_mem>>)
    } else {
    }
    %c1_i32_1 = arith.constant 1 : i32
    %6 = arith.addi %arg1, %c1_i32_1 : i32
    %c1_i32_2 = arith.constant 1 : i32
    %7 = arith.cmpi slt, %6, %c1_i32_2 : i32
    %8 = arith.extui %7 : i1 to i32
    %c0_i32_3 = arith.constant 0 : i32
    %9 = arith.cmpi ne, %8, %c0_i32_3 : i32
    scf.if %9 {
      %c1_i32_44 = arith.constant 1 : i32
      %79 = arith.addi %1, %c1_i32_44 : i32
      %c1_i32_45 = arith.constant 1 : i32
      %80 = arith.subi %c1_i32_45, %2 : i32
      %c512_i32 = arith.constant 512 : i32
      %81 = arith.muli %79, %c512_i32 : i32
      %82 = tpu.assume_multiple %81, 128 : i32
      %c0_i32_46 = arith.constant 0 : i32
      %83 = tpu.memref_slice %arg2[%c0_i32_46, %82] : memref<8x1280xf32, #tpu.memory_space<any>> -> memref<8x768xf32, #tpu.memory_space<any>>
      %c0_i32_47 = arith.constant 0 : i32
      %c0_i32_48 = arith.constant 0 : i32
      %84 = tpu.memref_slice %arg6[%80, %c0_i32_47, %c0_i32_48] : memref<2x8x768xf32, #tpu.memory_space<vmem>> -> memref<1x8x768xf32, #tpu.memory_space<vmem>>
      %85 = tpu.memref_squeeze %84 : memref<1x8x768xf32, #tpu.memory_space<vmem>> -> memref<8x768xf32, #tpu.memory_space<vmem>>
      %86 = tpu.memref_slice %arg7[%80] : memref<2x!tpu.dma_semaphore, #tpu.memory_space<semaphore_mem>> -> memref<1x!tpu.dma_semaphore, #tpu.memory_space<semaphore_mem>>
      %87 = tpu.memref_squeeze %86 : memref<1x!tpu.dma_semaphore, #tpu.memory_space<semaphore_mem>> -> memref<!tpu.dma_semaphore, #tpu.memory_space<semaphore_mem>>
      tpu.enqueue_dma source(%83 : memref<8x768xf32, #tpu.memory_space<any>>) target(%85 : memref<8x768xf32, #tpu.memory_space<vmem>>) target_semaphore(%87 : memref<!tpu.dma_semaphore, #tpu.memory_space<semaphore_mem>>)
    } else {
    }
    %c0_i32_4 = arith.constant 0 : i32
    %c0_i32_5 = arith.constant 0 : i32
    %10 = tpu.memref_slice %arg2[%c0_i32_4, %c0_i32_5] : memref<8x1280xf32, #tpu.memory_space<any>> -> memref<8x768xf32, #tpu.memory_space<any>>
    %c0_i32_6 = arith.constant 0 : i32
    %c0_i32_7 = arith.constant 0 : i32
    %11 = tpu.memref_slice %arg6[%2, %c0_i32_6, %c0_i32_7] : memref<2x8x768xf32, #tpu.memory_space<vmem>> -> memref<1x8x768xf32, #tpu.memory_space<vmem>>
    %12 = tpu.memref_squeeze %11 : memref<1x8x768xf32, #tpu.memory_space<vmem>> -> memref<8x768xf32, #tpu.memory_space<vmem>>
    %13 = tpu.memref_slice %arg7[%2] : memref<2x!tpu.dma_semaphore, #tpu.memory_space<semaphore_mem>> -> memref<1x!tpu.dma_semaphore, #tpu.memory_space<semaphore_mem>>
    %14 = tpu.memref_squeeze %13 : memref<1x!tpu.dma_semaphore, #tpu.memory_space<semaphore_mem>> -> memref<!tpu.dma_semaphore, #tpu.memory_space<semaphore_mem>>
    tpu.wait_dma2 semaphore(%14 : memref<!tpu.dma_semaphore, #tpu.memory_space<semaphore_mem>>) src(%10 : memref<8x768xf32, #tpu.memory_space<any>>) dst(%12 : memref<8x768xf32, #tpu.memory_space<vmem>>)
    %15 = arith.index_cast %2 : i32 to index
    %c0 = arith.constant 0 : index
    %c0_8 = arith.constant 0 : index
    %16 = vector.load %arg6[%15, %c0, %c0_8] : memref<2x8x768xf32, #tpu.memory_space<vmem>>, vector<1x8x768xf32>
    %17 = vector.shape_cast %16 : vector<1x8x768xf32> to vector<8x768xf32>
    %cst = arith.constant 0.000000e+00 : f32
    %18 = vector.broadcast %cst : f32 to vector<16x512xf32>
    %19 = vector.extract_strided_slice %17 {offsets = [0, 109], sizes = [8, 512], strides = [1, 1]} : vector<8x768xf32> to vector<8x512xf32>
    %c0_9 = arith.constant 0 : index
    %c0_10 = arith.constant 0 : index
    %c0_11 = arith.constant 0 : index
    %20 = vector.load %arg3[%c0_9, %c0_10, %c0_11] : memref<9x16x8xf32, #tpu.memory_space<vmem>>, vector<1x16x8xf32>
    %21 = vector.shape_cast %20 : vector<1x16x8xf32> to vector<16x8xf32>
    %cst_12 = arith.constant dense<0.000000e+00> : vector<16x512xf32>
    %22 = tpu.matmul %21, %19, %cst_12 {dimension_numbers = #tpu.dot_dimension_numbers<[1], [0], [0], [1], [0, 0, 1, 1], [], []>} : vector<16x8xf32>, vector<8x512xf32>, vector<16x512xf32> -> vector<16x512xf32>
    %23 = arith.addf %18, %22 : vector<16x512xf32>
    %24 = vector.extract_strided_slice %17 {offsets = [0, 110], sizes = [8, 512], strides = [1, 1]} : vector<8x768xf32> to vector<8x512xf32>
    %c1 = arith.constant 1 : index
    %c0_13 = arith.constant 0 : index
    %c0_14 = arith.constant 0 : index
    %25 = vector.load %arg3[%c1, %c0_13, %c0_14] : memref<9x16x8xf32, #tpu.memory_space<vmem>>, vector<1x16x8xf32>
    %26 = vector.shape_cast %25 : vector<1x16x8xf32> to vector<16x8xf32>
    %cst_15 = arith.constant dense<0.000000e+00> : vector<16x512xf32>
    %27 = tpu.matmul %26, %24, %cst_15 {dimension_numbers = #tpu.dot_dimension_numbers<[1], [0], [0], [1], [0, 0, 1, 1], [], []>} : vector<16x8xf32>, vector<8x512xf32>, vector<16x512xf32> -> vector<16x512xf32>
    %28 = arith.addf %23, %27 : vector<16x512xf32>
    %29 = vector.extract_strided_slice %17 {offsets = [0, 111], sizes = [8, 512], strides = [1, 1]} : vector<8x768xf32> to vector<8x512xf32>
    %c2 = arith.constant 2 : index
    %c0_16 = arith.constant 0 : index
    %c0_17 = arith.constant 0 : index
    %30 = vector.load %arg3[%c2, %c0_16, %c0_17] : memref<9x16x8xf32, #tpu.memory_space<vmem>>, vector<1x16x8xf32>
    %31 = vector.shape_cast %30 : vector<1x16x8xf32> to vector<16x8xf32>
    %cst_18 = arith.constant dense<0.000000e+00> : vector<16x512xf32>
    %32 = tpu.matmul %31, %29, %cst_18 {dimension_numbers = #tpu.dot_dimension_numbers<[1], [0], [0], [1], [0, 0, 1, 1], [], []>} : vector<16x8xf32>, vector<8x512xf32>, vector<16x512xf32> -> vector<16x512xf32>
    %33 = arith.addf %28, %32 : vector<16x512xf32>
    %34 = vector.extract_strided_slice %17 {offsets = [0, 127], sizes = [8, 512], strides = [1, 1]} : vector<8x768xf32> to vector<8x512xf32>
    %c3 = arith.constant 3 : index
    %c0_19 = arith.constant 0 : index
    %c0_20 = arith.constant 0 : index
    %35 = vector.load %arg3[%c3, %c0_19, %c0_20] : memref<9x16x8xf32, #tpu.memory_space<vmem>>, vector<1x16x8xf32>
    %36 = vector.shape_cast %35 : vector<1x16x8xf32> to vector<16x8xf32>
    %cst_21 = arith.constant dense<0.000000e+00> : vector<16x512xf32>
    %37 = tpu.matmul %36, %34, %cst_21 {dimension_numbers = #tpu.dot_dimension_numbers<[1], [0], [0], [1], [0, 0, 1, 1], [], []>} : vector<16x8xf32>, vector<8x512xf32>, vector<16x512xf32> -> vector<16x512xf32>
    %38 = arith.addf %33, %37 : vector<16x512xf32>
    %39 = vector.extract_strided_slice %17 {offsets = [0, 128], sizes = [8, 512], strides = [1, 1]} : vector<8x768xf32> to vector<8x512xf32>
    %c4 = arith.constant 4 : index
    %c0_22 = arith.constant 0 : index
    %c0_23 = arith.constant 0 : index
    %40 = vector.load %arg3[%c4, %c0_22, %c0_23] : memref<9x16x8xf32, #tpu.memory_space<vmem>>, vector<1x16x8xf32>
    %41 = vector.shape_cast %40 : vector<1x16x8xf32> to vector<16x8xf32>
    %cst_24 = arith.constant dense<0.000000e+00> : vector<16x512xf32>
    %42 = tpu.matmul %41, %39, %cst_24 {dimension_numbers = #tpu.dot_dimension_numbers<[1], [0], [0], [1], [0, 0, 1, 1], [], []>} : vector<16x8xf32>, vector<8x512xf32>, vector<16x512xf32> -> vector<16x512xf32>
    %43 = arith.addf %38, %42 : vector<16x512xf32>
    %44 = vector.extract_strided_slice %17 {offsets = [0, 129], sizes = [8, 512], strides = [1, 1]} : vector<8x768xf32> to vector<8x512xf32>
    %c5 = arith.constant 5 : index
    %c0_25 = arith.constant 0 : index
    %c0_26 = arith.constant 0 : index
    %45 = vector.load %arg3[%c5, %c0_25, %c0_26] : memref<9x16x8xf32, #tpu.memory_space<vmem>>, vector<1x16x8xf32>
    %46 = vector.shape_cast %45 : vector<1x16x8xf32> to vector<16x8xf32>
    %cst_27 = arith.constant dense<0.000000e+00> : vector<16x512xf32>
    %47 = tpu.matmul %46, %44, %cst_27 {dimension_numbers = #tpu.dot_dimension_numbers<[1], [0], [0], [1], [0, 0, 1, 1], [], []>} : vector<16x8xf32>, vector<8x512xf32>, vector<16x512xf32> -> vector<16x512xf32>
    %48 = arith.addf %43, %47 : vector<16x512xf32>
    %49 = vector.extract_strided_slice %17 {offsets = [0, 145], sizes = [8, 512], strides = [1, 1]} : vector<8x768xf32> to vector<8x512xf32>
    %c6 = arith.constant 6 : index
    %c0_28 = arith.constant 0 : index
    %c0_29 = arith.constant 0 : index
    %50 = vector.load %arg3[%c6, %c0_28, %c0_29] : memref<9x16x8xf32, #tpu.memory_space<vmem>>, vector<1x16x8xf32>
    %51 = vector.shape_cast %50 : vector<1x16x8xf32> to vector<16x8xf32>
    %cst_30 = arith.constant dense<0.000000e+00> : vector<16x512xf32>
    %52 = tpu.matmul %51, %49, %cst_30 {dimension_numbers = #tpu.dot_dimension_numbers<[1], [0], [0], [1], [0, 0, 1, 1], [], []>} : vector<16x8xf32>, vector<8x512xf32>, vector<16x512xf32> -> vector<16x512xf32>
    %53 = arith.addf %48, %52 : vector<16x512xf32>
    %54 = vector.extract_strided_slice %17 {offsets = [0, 146], sizes = [8, 512], strides = [1, 1]} : vector<8x768xf32> to vector<8x512xf32>
    %c7 = arith.constant 7 : index
    %c0_31 = arith.constant 0 : index
    %c0_32 = arith.constant 0 : index
    %55 = vector.load %arg3[%c7, %c0_31, %c0_32] : memref<9x16x8xf32, #tpu.memory_space<vmem>>, vector<1x16x8xf32>
    %56 = vector.shape_cast %55 : vector<1x16x8xf32> to vector<16x8xf32>
    %cst_33 = arith.constant dense<0.000000e+00> : vector<16x512xf32>
    %57 = tpu.matmul %56, %54, %cst_33 {dimension_numbers = #tpu.dot_dimension_numbers<[1], [0], [0], [1], [0, 0, 1, 1], [], []>} : vector<16x8xf32>, vector<8x512xf32>, vector<16x512xf32> -> vector<16x512xf32>
    %58 = arith.addf %53, %57 : vector<16x512xf32>
    %59 = vector.extract_strided_slice %17 {offsets = [0, 147], sizes = [8, 512], strides = [1, 1]} : vector<8x768xf32> to vector<8x512xf32>
    %c8 = arith.constant 8 : index
    %c0_34 = arith.constant 0 : index
    %c0_35 = arith.constant 0 : index
    %60 = vector.load %arg3[%c8, %c0_34, %c0_35] : memref<9x16x8xf32, #tpu.memory_space<vmem>>, vector<1x16x8xf32>
    %61 = vector.shape_cast %60 : vector<1x16x8xf32> to vector<16x8xf32>
    %cst_36 = arith.constant dense<0.000000e+00> : vector<16x512xf32>
    %62 = tpu.matmul %61, %59, %cst_36 {dimension_numbers = #tpu.dot_dimension_numbers<[1], [0], [0], [1], [0, 0, 1, 1], [], []>} : vector<16x8xf32>, vector<8x512xf32>, vector<16x512xf32> -> vector<16x512xf32>
    %63 = arith.addf %58, %62 : vector<16x512xf32>
    %64 = vector.extract_strided_slice %63 {offsets = [0, 0], sizes = [8, 512], strides = [1, 1]} : vector<16x512xf32> to vector<8x512xf32>
    %c0_37 = arith.constant 0 : index
    %c0_38 = arith.constant 0 : index
    %65 = vector.load %arg4[%c0_37, %c0_38] : memref<16x1xf32, #tpu.memory_space<vmem>>, vector<8x1xf32>
    %66 = vector.broadcast %65 : vector<8x1xf32> to vector<8x512xf32>
    %67 = arith.addf %64, %66 : vector<8x512xf32>
    %68 = vector.extract_strided_slice %63 {offsets = [8, 0], sizes = [8, 512], strides = [1, 1]} : vector<16x512xf32> to vector<8x512xf32>
    %c8_39 = arith.constant 8 : index
    %c0_40 = arith.constant 0 : index
    %69 = vector.load %arg4[%c8_39, %c0_40] : memref<16x1xf32, #tpu.memory_space<vmem>>, vector<8x1xf32>
    %70 = vector.broadcast %69 : vector<8x1xf32> to vector<8x512xf32>
    %71 = arith.addf %68, %70 : vector<8x512xf32>
    %72 = arith.negf %71 : vector<8x512xf32>
    %73 = math.exp %72 : vector<8x512xf32>
    %cst_41 = arith.constant 1.000000e+00 : f32
    %74 = vector.broadcast %cst_41 : f32 to vector<8x512xf32>
    %75 = arith.addf %74, %73 : vector<8x512xf32>
    %76 = arith.divf %74, %75 : vector<8x512xf32>
    %77 = arith.mulf %67, %76 : vector<8x512xf32>
    %c0_42 = arith.constant 0 : index
    %c0_43 = arith.constant 0 : index
    %78 = vector.load %arg5[%c0_42, %c0_43] : memref<8x512xf32, #tpu.memory_space<vmem>>, vector<8x512xf32>
    tpu.vector_store %arg5[%c0_42, %c0_43], %77 {strides = array<i32>} : memref<8x512xf32, #tpu.memory_space<vmem>>, vector<8x512xf32>,
    return
  }
  func.func @transform_1(%arg0: i32, %arg1: i32) -> (i32, i32, i32) {
    %c0_i32 = arith.constant 0 : i32
    %c0_i32_0 = arith.constant 0 : i32
    %c0_i32_1 = arith.constant 0 : i32
    %c0_i32_2 = arith.constant 0 : i32
    return %c0_i32, %c0_i32_0, %c0_i32_1 : i32, i32, i32
  }
  func.func @transform_2(%arg0: i32, %arg1: i32) -> (i32, i32) {
    %c0_i32 = arith.constant 0 : i32
    %c0_i32_0 = arith.constant 0 : i32
    %c0_i32_1 = arith.constant 0 : i32
    return %c0_i32, %c0_i32_0 : i32, i32
  }
  func.func @transform_3(%arg0: i32, %arg1: i32) -> (i32, i32) {
    %c1_i32 = arith.constant 1 : i32
    %0 = arith.muli %arg0, %c1_i32 : i32
    %1 = arith.addi %0, %arg1 : i32
    %c0_i32 = arith.constant 0 : i32
    %c0_i32_0 = arith.constant 0 : i32
    return %c0_i32, %1 : i32, i32
  }
}

</mosaic_0001>

<llo_original>
// kernel: tpu_custom_call.1
$region0: #{tpu_custom_call.1}
  #allocation0 [shape = 'u32[]', space=smem, size = 0x4, offset = 0x4, fixed_abs, tag = 'smem constant byte address 0x4 - core index']
  #allocation1 [shape = 'u32[144,128]{1,0:T(1,128)}', space=vmem, size = 0x12000, scoped, tag = 'internal scratch']
  #allocation2 [shape = 'f32[2,8,768]{2,1,0:T(8,128)}', space=vmem, size = 0xc000, scoped, tag = 'scratch operand']
  #allocation3 [shape = 's32[2]{0}', space=sflag, size = 0x8, scoped, tag = 'scratch operand']
  #allocation6 [shape = 's32[]', space=sflag, size = 0x4, offset = 0, fixed_abs, tag = 'sflag constant byte address 0x0 - dummy sync flag']
  #allocation7 [shape = 's32[]', space=sflag, size = 0x4, offset = 0, fixed_abs, tag = 'sflag constant byte address 0x0 - dummy sync flag']
  %s0 = inlined_call_operand.vmem [shape: f32[8,1280], index: 0, kind: input, shape index: {}]
  %s1 = inlined_call_operand.vmem [shape: f32[9,16,8], index: 1, kind: input, shape index: {}]
  %s2 = inlined_call_operand.vmem [shape: f32[16,1], index: 2, kind: input, shape index: {}]
  %s3 = inlined_call_operand.hbm [shape: f32[8,1024], index: 3, kind: output, shape index: {}]
  %s4 = sld [smem:[#allocation0]]
  $region117: #{tpu_custom_call.1} parent=0
    _
  %s6 = ssub.s32 1, %s4
  %s7 = scalar_select 0, %s6, %s4
  $region1: #{tpu_custom_call.1} parent=0
    #allocation4 [shape = 'u8[32768]{0}', space=vmem, size = 0x8000, scoped, tag = 'output window, operand 0']
    #allocation5 [shape = 's32[2]{0}', space=sflag, size = 0x8, scoped, tag = 'scoped memory for tpu_custom_call.1']
    %8 = vsyncpa [#allocation5], 0
    %s9 = scalar_lea.sflag [#allocation5], 1
    %10 = vsyncpa %s9, 0
    loop: start=0, step=1, limit=4
    $region2: #{tpu_custom_call.1} parent=1 // loop_pre_header
      _
    $region3: #{tpu_custom_call.1} parent=1 // loop_header
      %s12 = sphi 0, %s16
      %p13 = scmp.ge.s32.totalorder %s12, 4
      %s19 = sphi 0, %s31
      %s20 = sphi 0, %s27
      %s21 = sphi 0, %s19
      %s22 = sphi 0, %s20
      %s23 = sphi 0, %s21
      %s24 = sphi 0, %s22
      %s32 = sphi 0, %s32
      %s34 = sphi 0, %s32
      %s35 = sphi 0, %s34
      %s49 = sphi 0, %s35
      %s53 = sphi 0, %s53
      %s55 = sphi 0, %s53
      %s56 = sphi 0, %s55
      %s70 = sphi 0, %s56
      %s78 = sphi 0, %s80
      %s81 = sphi 0, %s78
      %s82 = sphi 0, %s81
      %s98 = sphi 0, %s82
    $region4: #{tpu_custom_call.1} parent=1 // loop_header_branch
      %15 = sbr.rel (%p13) target = $region8
    $region5: #{tpu_custom_call.1} parent=1 // loop_body
      %s17 = ssub.s32 %s12, 1
      %s18 = ssub.s32 %s12, 2
      %s25 = sadd.s32 1, %s20
      %p26 = scmp.ge.s32.totalorder %s25, 1
      %s27 = scalar_select %p26, 0, %s25
      %s28 = sadd.s32 1, %s19
      %s29 = scalar_select %p26, %s28, %s19
      %p30 = scmp.ge.s32.totalorder %s29, 2
      %s31 = scalar_select %p30, 0, %s29
      %s33 = sadd.s32 %s32, 1
      %p36 = scmp.eq.s32.totalorder %s12, 1
      %p37 = scmp.ne.s32.totalorder %s32, %s34
      %p38 = scmp.eq.s32.totalorder %s12, 0
      %p39 = por %p37, %p38
      %p40 = scmp.ne.s32.totalorder %s32, %s34
      %p41 = scmp.eq.s32.totalorder %s17, 1
      %p42 = por %p40, %p41
      %p43 = scmp.ne.s32.totalorder %s34, %s35
      %p44 = scmp.eq.s32.totalorder %s17, 0
      %p45 = por %p43, %p44
      %p46 = scmp.ne.s32.totalorder %s34, %s35
      %p47 = scmp.eq.s32.totalorder %s18, 1
      %p48 = por %p46, %p47
      %p50 = scmp.ne.s32.totalorder %s35, %s49
      %p51 = scmp.eq.s32.totalorder %s18, 0
      %p52 = por %p50, %p51
      %s54 = sadd.s32 %s53, 1
      %p57 = scmp.eq.s32.totalorder %s12, 1
      %p58 = scmp.ne.s32.totalorder %s53, %s55
      %p59 = scmp.eq.s32.totalorder %s12, 0
      %p60 = por %p58, %p59
      %p61 = scmp.ne.s32.totalorder %s53, %s55
      %p62 = scmp.eq.s32.totalorder %s17, 1
      %p63 = por %p61, %p62
      %p64 = scmp.ne.s32.totalorder %s55, %s56
      %p65 = scmp.eq.s32.totalorder %s17, 0
      %p66 = por %p64, %p65
      %p67 = scmp.ne.s32.totalorder %s55, %s56
      %p68 = scmp.eq.s32.totalorder %s18, 1
      %p69 = por %p67, %p68
      %p71 = scmp.ne.s32.totalorder %s56, %s70
      %p72 = scmp.eq.s32.totalorder %s18, 0
      %p73 = por %p71, %p72
      %s74 = sadd.s32 %s19, %s20
      %s75 = sadd.s32 %s31, %s27
      %s76 = ssub.s32 %s74, %s75
      %p77 = scmp.eq.s32.totalorder %s76, 0
      %s79 = sadd.s32 %s78, 1
      %s80 = scalar_select %p77, %s78, %s79
      %p83 = pneg %p77
      %p84 = scmp.eq.s32.totalorder %s12, 1
      %p85 = por %p83, %p84
      %p86 = scmp.ne.s32.totalorder %s78, %s81
      %p87 = scmp.eq.s32.totalorder %s12, 0
      %p88 = por %p86, %p87
      %p89 = scmp.ne.s32.totalorder %s78, %s81
      %p90 = scmp.eq.s32.totalorder %s17, 1
      %p91 = por %p89, %p90
      %p92 = scmp.ne.s32.totalorder %s81, %s82
      %p93 = scmp.eq.s32.totalorder %s17, 0
      %p94 = por %p92, %p93
      %p95 = scmp.ne.s32.totalorder %s81, %s82
      %p96 = scmp.eq.s32.totalorder %s18, 1
      %p97 = por %p95, %p96
      %p99 = scmp.ne.s32.totalorder %s82, %s98
      %p100 = scmp.eq.s32.totalorder %s18, 0
      %p101 = por %p99, %p100
      %p102 = scmp.le.s32.totalorder 1, %s12
      %p103 = scmp.lt.s32.totalorder %s12, 3
      %p104 = pnand %p102, %p103
      %p105 = pneg %p104
      // Predicated region
      $region9: #{tpu_custom_call.1} parent=5 // pred_check
        _
      $region10: #{tpu_custom_call.1} parent=5 // pred_check_branch
        %107 = sbr.rel (%p104) target = $region12
      $region11: #{tpu_custom_call.1} parent=5 // pred_region
        %s108 = ssub.s32 %s12, 1
        // Predicated region
        $region13: #{tpu_custom_call.1} parent=11 // pred_check
          %p109 = pneg %p45
        $region14: #{tpu_custom_call.1} parent=11 // pred_check_branch
          %111 = sbr.rel (%p109) target = $region16
        $region15: #{tpu_custom_call.1} parent=11 // pred_region
          _
        $region16: #{tpu_custom_call.1} parent=11 // pred_fallthru
          _
        // Predicated region
        $region17: #{tpu_custom_call.1} parent=11 // pred_check
          %p112 = pneg %p66
        $region18: #{tpu_custom_call.1} parent=11 // pred_check_branch
          %114 = sbr.rel (%p112) target = $region20
        $region19: #{tpu_custom_call.1} parent=11 // pred_region
          _
        $region20: #{tpu_custom_call.1} parent=11 // pred_fallthru
          _
      $region12: #{tpu_custom_call.1} parent=5 // pred_fallthru
        _
      %p115 = scmp.lt.s32.totalorder %s12, 2
      // Predicated region
      $region21: #{tpu_custom_call.1} parent=5 // pred_check
        %p116 = pneg %p115
      $region22: #{tpu_custom_call.1} parent=5 // pred_check_branch
        %118 = sbr.rel (%p116) target = $region24
      $region23: #{tpu_custom_call.1} parent=5 // pred_region
        _
      $region24: #{tpu_custom_call.1} parent=5 // pred_fallthru
        _
      %p119 = scmp.le.s32.totalorder 1, %s12
      %p120 = scmp.lt.s32.totalorder %s12, 3
      %p121 = pnand %p119, %p120
      %p122 = pneg %p121
      // Predicated region
      $region25: #{tpu_custom_call.1} parent=5 // pred_check
        _
      $region26: #{tpu_custom_call.1} parent=5 // pred_check_branch
        %124 = sbr.rel (%p121) target = $region28
      $region27: #{tpu_custom_call.1} parent=5 // pred_region
        %s125 = ssub.s32 %s12, 1
        %p126 = pneg %p45
        %p127 = pneg %p42
        %p128 = pneg %p66
        %p129 = pneg %p63
        %p130 = pneg %p94
        %p131 = pneg %p91
        %s132 = sand.u32 %s81, 1
        %s133 = scalar_lea.sflag [#allocation5], %s132
        %s134 = sand.u32 %s81, 1
        %s135 = smul.addr %s134, 32
        %s136 = scalar_lea.vmem [#allocation4], %s135
        %s137 = sadd.s32 %s21, %s22
        %s138 = smul.u32 4, %s137
        %s139 = sadd.s32 %s21, %s22
        %p140 = scmp.lt.s32.totalorder %s22, 0
        %s141 = ssub.s32 0, %s22
        %s142 = scalar_select %p140, %s141, %s22
        %s143 = sand.u32 %s142, 1
        %s144 = ssub.s32 0, %s143
        %s145 = scalar_select %p140, %s144, %s143
        %p146 = scmp.eq.s32.totalorder %s22, 0
        // Predicated region
        $region29: #{tpu_custom_call.1} parent=27 // pred_check
          %p147 = pneg %p146
        $region30: #{tpu_custom_call.1} parent=27 // pred_check_branch
          %149 = sbr.rel (%p147) target = $region32
        $region31: #{tpu_custom_call.1} parent=27 // pred_region
          %s150 = smul.u32 %s139, 512
          %s151 = sshra.s32 %s150, 7
          %s152 = sand.u32 %s150, 127
          %s153 = smul.addr %s151, 8
          %s154 = scalar_lea.vmem %s0, %s153
          %s155 = smul.u32 %s145, 6
          %s156 = smul.addr %s155, 8
          %s157 = scalar_lea.vmem [#allocation2], %s156
          %s158 = scalar_lea.sflag [#allocation3], %s145
          %p160 = scmp.lt.u32.totalorder 48, 8
          %p161 = pneg %p160
          // Predicated region
          $region33: #{tpu_custom_call.1} parent=31 // pred_check
            _
          $region34: #{tpu_custom_call.1} parent=31 // pred_check_branch
            %163 = sbr.rel (%p160) target = $region36
          $region35: #{tpu_custom_call.1} parent=31 // pred_region
            %s178 = sand.u32 48, 7
            %p179 = scmp.eq.s32.totalorder %s178, 0
            // Predicated region
            $region48: #{tpu_custom_call.1} parent=35 // pred_check
              %p180 = pneg %p179
            $region49: #{tpu_custom_call.1} parent=35 // pred_check_branch
              %182 = sbr.rel (%p180) target = $region51
            $region50: #{tpu_custom_call.1} parent=35 // pred_region
              loop: start=0, step=1, limit=1
              $region52: #{tpu_custom_call.1} parent=50 // loop_pre_header
                _
              $region53: #{tpu_custom_call.1} parent=50 // loop_header
                %s184 = sphi 0, %s188
                %p185 = scmp.ge.s32.totalorder %s184, 1
                %s189 = sphi %s154, %s154
                %s190 = sphi %s157, %s157
              $region54: #{tpu_custom_call.1} parent=50 // loop_header_branch
                %187 = sbr.rel (%p185) target = $region58
              $region55: #{tpu_custom_call.1} parent=50 // loop_body
                %v191 = vld [vmem:[%s189] sm:$0xff]
                %192 = vst [vmem:[%s190] sm:$0xff] %v191
                %v193 = vld [vmem:[%s189 + $0x8] sm:$0xff]
                %194 = vst [vmem:[%s190 + $0x8] sm:$0xff] %v193
                %v195 = vld [vmem:[%s189 + $0x10] sm:$0xff]
                %196 = vst [vmem:[%s190 + $0x10] sm:$0xff] %v195
                %v197 = vld [vmem:[%s189 + $0x18] sm:$0xff]
                %198 = vst [vmem:[%s190 + $0x18] sm:$0xff] %v197
                %v199 = vld [vmem:[%s189 + $0x20] sm:$0xff]
                %200 = vst [vmem:[%s190 + $0x20] sm:$0xff] %v199
                %v201 = vld [vmem:[%s189 + $0x28] sm:$0xff]
                %202 = vst [vmem:[%s190 + $0x28] sm:$0xff] %v201
              $region56: #{tpu_custom_call.1} parent=50 // loop_footer
                %s188 = sadd.s32 1, %s184
              $region57: #{tpu_custom_call.1} parent=50 // loop_footer_branch
                %183 = sbr.rel target = $region53
              $region58: #{tpu_custom_call.1} parent=50 // loop_exit
                _
            $region51: #{tpu_custom_call.1} parent=35 // pred_fallthru
              _
            %p203 = pneg %p179
            // Predicated region
            $region59: #{tpu_custom_call.1} parent=35 // pred_check
              _
            $region60: #{tpu_custom_call.1} parent=35 // pred_check_branch
              %205 = sbr.rel (%p179) target = $region62
            $region61: #{tpu_custom_call.1} parent=35 // pred_region
              %s206 = sand.u32 48, 7
            $region62: #{tpu_custom_call.1} parent=35 // pred_fallthru
              _
          $region36: #{tpu_custom_call.1} parent=31 // pred_fallthru
            _
          // Predicated region
          $region37: #{tpu_custom_call.1} parent=31 // pred_check
            %p164 = pneg %p160
          $region38: #{tpu_custom_call.1} parent=31 // pred_check_branch
            %166 = sbr.rel (%p164) target = $region40
          $region39: #{tpu_custom_call.1} parent=31 // pred_region
            %s167 = sshllo.u32 0, 48
            loop: start=0, step=1, limit=1
            $region41: #{tpu_custom_call.1} parent=39 // loop_pre_header
              _
            $region42: #{tpu_custom_call.1} parent=39 // loop_header
              %s169 = sphi 0, %s173
              %p170 = scmp.ge.s32.totalorder %s169, 1
              %s174 = sphi %s154, %s154
              %s175 = sphi %s157, %s157
            $region43: #{tpu_custom_call.1} parent=39 // loop_header_branch
              %172 = sbr.rel (%p170) target = $region47
            $region44: #{tpu_custom_call.1} parent=39 // loop_body
              %v176 = vld [vmem:[%s174] sm:%s167]
              %177 = vst [vmem:[%s175] sm:%s167] %v176
            $region45: #{tpu_custom_call.1} parent=39 // loop_footer
              %s173 = sadd.s32 1, %s169
            $region46: #{tpu_custom_call.1} parent=39 // loop_footer_branch
              %168 = sbr.rel target = $region42
            $region47: #{tpu_custom_call.1} parent=39 // loop_exit
              _
          $region40: #{tpu_custom_call.1} parent=31 // pred_fallthru
            _
          // Predicated region
          $region63: #{tpu_custom_call.1} parent=31 // pred_check
            _
          $region64: #{tpu_custom_call.1} parent=31 // pred_check_branch
            %209 = sbr.rel (0) target = $region66
          $region65: #{tpu_custom_call.1} parent=31 // pred_region
            %210 = vsyncadd %s158, 768
          $region66: #{tpu_custom_call.1} parent=31 // pred_fallthru
            _
        $region32: #{tpu_custom_call.1} parent=27 // pred_fallthru
          _
        %s211 = sadd.s32 %s22, 1
        %p212 = scmp.lt.s32.totalorder %s211, 1
        // Predicated region
        $region67: #{tpu_custom_call.1} parent=27 // pred_check
          %p213 = pneg %p212
        $region68: #{tpu_custom_call.1} parent=27 // pred_check_branch
          %215 = sbr.rel (%p213) target = $region70
        $region69: #{tpu_custom_call.1} parent=27 // pred_region
          %s216 = sadd.s32 %s139, 1
          %s217 = ssub.s32 1, %s145
          %s218 = smul.u32 %s216, 512
          %s219 = sshra.s32 %s218, 7
          %s220 = sand.u32 %s218, 127
          %s221 = smul.addr %s219, 8
          %s222 = scalar_lea.vmem %s0, %s221
          %s223 = smul.u32 %s217, 6
          %s224 = smul.addr %s223, 8
          %s225 = scalar_lea.vmem [#allocation2], %s224
          %s226 = scalar_lea.sflag [#allocation3], %s217
          %p228 = scmp.lt.u32.totalorder 48, 8
          %p229 = pneg %p228
          // Predicated region
          $region71: #{tpu_custom_call.1} parent=69 // pred_check
            _
          $region72: #{tpu_custom_call.1} parent=69 // pred_check_branch
            %231 = sbr.rel (%p228) target = $region74
          $region73: #{tpu_custom_call.1} parent=69 // pred_region
            %s246 = sand.u32 48, 7
            %p247 = scmp.eq.s32.totalorder %s246, 0
            // Predicated region
            $region86: #{tpu_custom_call.1} parent=73 // pred_check
              %p248 = pneg %p247
            $region87: #{tpu_custom_call.1} parent=73 // pred_check_branch
              %250 = sbr.rel (%p248) target = $region89
            $region88: #{tpu_custom_call.1} parent=73 // pred_region
              loop: start=0, step=1, limit=1
              $region90: #{tpu_custom_call.1} parent=88 // loop_pre_header
                _
              $region91: #{tpu_custom_call.1} parent=88 // loop_header
                %s252 = sphi 0, %s256
                %p253 = scmp.ge.s32.totalorder %s252, 1
                %s257 = sphi %s222, %s222
                %s258 = sphi %s225, %s225
              $region92: #{tpu_custom_call.1} parent=88 // loop_header_branch
                %255 = sbr.rel (%p253) target = $region96
              $region93: #{tpu_custom_call.1} parent=88 // loop_body
                %v259 = vld [vmem:[%s257] sm:$0xff]
                %260 = vst [vmem:[%s258] sm:$0xff] %v259
                %v261 = vld [vmem:[%s257 + $0x8] sm:$0xff]
                %262 = vst [vmem:[%s258 + $0x8] sm:$0xff] %v261
                %v263 = vld [vmem:[%s257 + $0x10] sm:$0xff]
                %264 = vst [vmem:[%s258 + $0x10] sm:$0xff] %v263
                %v265 = vld [vmem:[%s257 + $0x18] sm:$0xff]
                %266 = vst [vmem:[%s258 + $0x18] sm:$0xff] %v265
                %v267 = vld [vmem:[%s257 + $0x20] sm:$0xff]
                %268 = vst [vmem:[%s258 + $0x20] sm:$0xff] %v267
                %v269 = vld [vmem:[%s257 + $0x28] sm:$0xff]
                %270 = vst [vmem:[%s258 + $0x28] sm:$0xff] %v269
              $region94: #{tpu_custom_call.1} parent=88 // loop_footer
                %s256 = sadd.s32 1, %s252
              $region95: #{tpu_custom_call.1} parent=88 // loop_footer_branch
                %251 = sbr.rel target = $region91
              $region96: #{tpu_custom_call.1} parent=88 // loop_exit
                _
            $region89: #{tpu_custom_call.1} parent=73 // pred_fallthru
              _
            %p271 = pneg %p247
            // Predicated region
            $region97: #{tpu_custom_call.1} parent=73 // pred_check
              _
            $region98: #{tpu_custom_call.1} parent=73 // pred_check_branch
              %273 = sbr.rel (%p247) target = $region100
            $region99: #{tpu_custom_call.1} parent=73 // pred_region
              %s274 = sand.u32 48, 7
            $region100: #{tpu_custom_call.1} parent=73 // pred_fallthru
              _
          $region74: #{tpu_custom_call.1} parent=69 // pred_fallthru
            _
          // Predicated region
          $region75: #{tpu_custom_call.1} parent=69 // pred_check
            %p232 = pneg %p228
          $region76: #{tpu_custom_call.1} parent=69 // pred_check_branch
            %234 = sbr.rel (%p232) target = $region78
          $region77: #{tpu_custom_call.1} parent=69 // pred_region
            %s235 = sshllo.u32 0, 48
            loop: start=0, step=1, limit=1
            $region79: #{tpu_custom_call.1} parent=77 // loop_pre_header
              _
            $region80: #{tpu_custom_call.1} parent=77 // loop_header
              %s237 = sphi 0, %s241
              %p238 = scmp.ge.s32.totalorder %s237, 1
              %s242 = sphi %s222, %s222
              %s243 = sphi %s225, %s225
            $region81: #{tpu_custom_call.1} parent=77 // loop_header_branch
              %240 = sbr.rel (%p238) target = $region85
            $region82: #{tpu_custom_call.1} parent=77 // loop_body
              %v244 = vld [vmem:[%s242] sm:%s235]
              %245 = vst [vmem:[%s243] sm:%s235] %v244
            $region83: #{tpu_custom_call.1} parent=77 // loop_footer
              %s241 = sadd.s32 1, %s237
            $region84: #{tpu_custom_call.1} parent=77 // loop_footer_branch
              %236 = sbr.rel target = $region80
            $region85: #{tpu_custom_call.1} parent=77 // loop_exit
              _
          $region78: #{tpu_custom_call.1} parent=69 // pred_fallthru
            _
          // Predicated region
          $region101: #{tpu_custom_call.1} parent=69 // pred_check
            _
          $region102: #{tpu_custom_call.1} parent=69 // pred_check_branch
            %277 = sbr.rel (0) target = $region104
          $region103: #{tpu_custom_call.1} parent=69 // pred_region
            %278 = vsyncadd %s226, 768
          $region104: #{tpu_custom_call.1} parent=69 // pred_fallthru
            _
        $region70: #{tpu_custom_call.1} parent=27 // pred_fallthru
          _
        %s279 = smul.u32 %s145, 6
        %s280 = smul.addr %s279, 8
        %s281 = scalar_lea.vmem [#allocation2], %s280
        %s282 = scalar_lea.sflag [#allocation3], %s145
        %s283 = smul.u32 8, 1
        %s284 = smul.u32 %s283, 6
        %s285 = sshll.u32 %s284, 4
        %286 = dma.done %s282, %s285
        %v287 = vld [vmem:[%s281] sm:$0xff]
        %v288 = vld [vmem:[%s281 + $0x8] sm:$0xff]
        %v289 = vld [vmem:[%s281 + $0x10] sm:$0xff]
        %v290 = vld [vmem:[%s281 + $0x18] sm:$0xff]
        %v291 = vld [vmem:[%s281 + $0x20] sm:$0xff]
        %v292 = vld [vmem:[%s281 + $0x28] sm:$0xff]
        %v293 = vld [vmem:[%s1] sm:$0xff]
        %v294 = vld [vmem:[%s1 + $0x8] sm:$0xff]
        %s295 = scalar_lea.vmem %s1, 16
        %v296 = vld [vmem:[%s295] sm:$0xff]
        %v297 = vld [vmem:[%s295 + $0x8] sm:$0xff]
        %303 = vrot.lane.b32.xlu0 %v287, 18
        %v304 = vpop.permute.xlu0 %303
        %305 = vrot.lane.b32.xlu0 %v288, 18
        %v306 = vpop.permute.xlu0 %305
        %307 = vrot.lane.b32.xlu0 %v289, 18
        %v308 = vpop.permute.xlu0 %307
        %309 = vrot.lane.b32.xlu0 %v290, 18
        %v310 = vpop.permute.xlu0 %309
        %311 = vrot.lane.b32.xlu0 %v291, 18
        %v312 = vpop.permute.xlu0 %311
        %vm313 = vcmask 146432
        %v314 = vsel %vm313, %v304, %v306
        %v315 = vsel %vm313, %v306, %v308
        %v316 = vsel %vm313, %v308, %v310
        %v317 = vsel %vm313, %v310, %v312
        %vm322 = vcmask 64512
        %v324 = vsel %vm322, %v296, 0
        %v327 = vsel %vm322, %v297, 0
        %329 = vmatprep.subr.mxu0 %v315
        %330 = vmatpush1.msra.mxu0 %v314
        %331 = vmatprep.subr.mxu0 0.0
        %332 = vmatpush1.msra.mxu0 0.0
        %333 = vmatprep.subr.mxu0 0.0
        %334 = vmatpush1.msra.mxu0 0.0
        %335 = vmatprep.subr.mxu0 0.0
        %336 = vmatpush1.msra.mxu0 0.0
        %337 = vmatprep.subr.mxu0 0.0
        %338 = vmatpush1.msra.mxu0 0.0
        %339 = vmatprep.subr.mxu0 0.0
        %340 = vmatpush1.msra.mxu0 0.0
        %341 = vmatprep.subr.mxu0 0.0
        %342 = vmatpush1.msra.mxu0 0.0
        %343 = vmatprep.subr.mxu0 0.0
        %344 = vmatpush1.msra.mxu0 0.0
        %345 = vmatprep.subr.mxu0 0.0
        %346 = vmatpush1.msra.mxu0 0.0
        %347 = vmatprep.subr.mxu0 0.0
        %348 = vmatpush1.msra.mxu0 0.0
        %349 = vmatprep.subr.mxu0 0.0
        %350 = vmatpush1.msra.mxu0 0.0
        %351 = vmatprep.subr.mxu0 0.0
        %352 = vmatpush1.msra.mxu0 0.0
        %353 = vmatprep.subr.mxu0 0.0
        %354 = vmatpush1.msra.mxu0 0.0
        %355 = vmatprep.subr.mxu0 0.0
        %356 = vmatpush1.msra.mxu0 0.0
        %357 = vmatprep.subr.mxu0 0.0
        %358 = vmatpush1.msra.mxu0 0.0
        %359 = vmatprep.subr.mxu0 0.0
        %360 = vmatpush1.msra.mxu0 0.0
        %361 = vmatprep.subr.mxu0 0.0
        %362 = vmatpush1.msra.mxu0 0.0
        %363 = vmatprep.subr.mxu0 0.0
        %364 = vmatpush1.msra.mxu0 0.0
        %365 = vmatprep.subr.mxu0 0.0
        %366 = vmatpush1.msra.mxu0 0.0
        %367 = vmatprep.subr.mxu0 0.0
        %368 = vmatpush1.msra.mxu0 0.0
        %369 = vmatprep.subr.mxu0 0.0
        %370 = vmatpush1.msra.mxu0 0.0
        %371 = vmatprep.subr.mxu0 0.0
        %372 = vmatpush1.msra.mxu0 0.0
        %373 = vmatprep.subr.mxu0 0.0
        %374 = vmatpush1.msra.mxu0 0.0
        %375 = vmatprep.subr.mxu0 0.0
        %376 = vmatpush1.msra.mxu0 0.0
        %377 = vmatprep.subr.mxu0 0.0
        %378 = vmatpush1.msra.mxu0 0.0
        %379 = vmatprep.subr.mxu0 0.0
        %380 = vmatpush1.msra.mxu0 0.0
        %381 = vmatprep.subr.mxu0 0.0
        %382 = vmatpush1.msra.mxu0 0.0
        %383 = vmatprep.subr.mxu0 0.0
        %384 = vmatpush1.msra.mxu0 0.0
        %385 = vmatprep.subr.mxu0 0.0
        %386 = vmatpush1.msra.mxu0 0.0
        %387 = vmatprep.subr.mxu0 0.0
        %388 = vmatpush1.msra.mxu0 0.0
        %389 = vmatprep.subr.mxu0 0.0
        %390 = vmatpush1.msra.mxu0 0.0
        %391 = vmatprep.subr.mxu0 0.0
        %392 = vmatpush1.msra.mxu0 0.0
        %393 = vmatprep.mubr.f32.mxu0 0.0
        %394 = vmatmul.mubr.f32.gmra.mrb[0].mxu0 %v324
        %v395 = vpop.f32.mrb[0].mxu0
        %v396 = vadd.f32 0.0, %v395
        %v397 = vpop.f32.mrb[0].mxu0
        %v398 = vadd.f32 0.0, %v397
        %399 = vmatprep.mubr.f32.mxu0 0.0
        %400 = vmatmul.mubr.f32.gmra.mrb[0].mxu0 %v327
        %v401 = vpop.f32.mrb[0].mxu0
        %v402 = vadd.f32 0.0, %v401
        %v403 = vpop.f32.mrb[0].mxu0
        %v404 = vadd.f32 0.0, %v403
        %405 = vdwg.mxu0
        %406 = vmatprep.subr.mxu0 %v317
        %407 = vmatpush1.msra.mxu0 %v316
        %408 = vmatprep.subr.mxu0 0.0
        %409 = vmatpush1.msra.mxu0 0.0
        %410 = vmatprep.subr.mxu0 0.0
        %411 = vmatpush1.msra.mxu0 0.0
        %412 = vmatprep.subr.mxu0 0.0
        %413 = vmatpush1.msra.mxu0 0.0
        %414 = vmatprep.subr.mxu0 0.0
        %415 = vmatpush1.msra.mxu0 0.0
        %416 = vmatprep.subr.mxu0 0.0
        %417 = vmatpush1.msra.mxu0 0.0
        %418 = vmatprep.subr.mxu0 0.0
        %419 = vmatpush1.msra.mxu0 0.0
        %420 = vmatprep.subr.mxu0 0.0
        %421 = vmatpush1.msra.mxu0 0.0
        %422 = vmatprep.subr.mxu0 0.0
        %423 = vmatpush1.msra.mxu0 0.0
        %424 = vmatprep.subr.mxu0 0.0
        %425 = vmatpush1.msra.mxu0 0.0
        %426 = vmatprep.subr.mxu0 0.0
        %427 = vmatpush1.msra.mxu0 0.0
        %428 = vmatprep.subr.mxu0 0.0
        %429 = vmatpush1.msra.mxu0 0.0
        %430 = vmatprep.subr.mxu0 0.0
        %431 = vmatpush1.msra.mxu0 0.0
        %432 = vmatprep.subr.mxu0 0.0
        %433 = vmatpush1.msra.mxu0 0.0
        %434 = vmatprep.subr.mxu0 0.0
        %435 = vmatpush1.msra.mxu0 0.0
        %436 = vmatprep.subr.mxu0 0.0
        %437 = vmatpush1.msra.mxu0 0.0
        %438 = vmatprep.subr.mxu0 0.0
        %439 = vmatpush1.msra.mxu0 0.0
        %440 = vmatprep.subr.mxu0 0.0
        %441 = vmatpush1.msra.mxu0 0.0
        %442 = vmatprep.subr.mxu0 0.0
        %443 = vmatpush1.msra.mxu0 0.0
        %444 = vmatprep.subr.mxu0 0.0
        %445 = vmatpush1.msra.mxu0 0.0
        %446 = vmatprep.subr.mxu0 0.0
        %447 = vmatpush1.msra.mxu0 0.0
        %448 = vmatprep.subr.mxu0 0.0
        %449 = vmatpush1.msra.mxu0 0.0
        %450 = vmatprep.subr.mxu0 0.0
        %451 = vmatpush1.msra.mxu0 0.0
        %452 = vmatprep.subr.mxu0 0.0
        %453 = vmatpush1.msra.mxu0 0.0
        %454 = vmatprep.subr.mxu0 0.0
        %455 = vmatpush1.msra.mxu0 0.0
        %456 = vmatprep.subr.mxu0 0.0
        %457 = vmatpush1.msra.mxu0 0.0
        %458 = vmatprep.subr.mxu0 0.0
        %459 = vmatpush1.msra.mxu0 0.0
        %460 = vmatprep.subr.mxu0 0.0
        %461 = vmatpush1.msra.mxu0 0.0
        %462 = vmatprep.subr.mxu0 0.0
        %463 = vmatpush1.msra.mxu0 0.0
        %464 = vmatprep.subr.mxu0 0.0
        %465 = vmatpush1.msra.mxu0 0.0
        %466 = vmatprep.subr.mxu0 0.0
        %467 = vmatpush1.msra.mxu0 0.0
        %468 = vmatprep.subr.mxu0 0.0
        %469 = vmatpush1.msra.mxu0 0.0
        %470 = vmatprep.mubr.f32.mxu0 0.0
        %471 = vmatmul.mubr.f32.gmra.mrb[0].mxu0 %v324
        %v472 = vpop.f32.mrb[0].mxu0
        %v473 = vadd.f32 0.0, %v472
        %v474 = vpop.f32.mrb[0].mxu0
        %v475 = vadd.f32 0.0, %v474
        %476 = vmatprep.mubr.f32.mxu0 0.0
        %477 = vmatmul.mubr.f32.gmra.mrb[0].mxu0 %v327
        %v478 = vpop.f32.mrb[0].mxu0
        %v479 = vadd.f32 0.0, %v478
        %v480 = vpop.f32.mrb[0].mxu0
        %v481 = vadd.f32 0.0, %v480
        %482 = vdwg.mxu0
        %483 = vrot.lane.b32.xlu0 %v287, 19
        %v484 = vpop.permute.xlu0 %483
        %485 = vrot.lane.b32.xlu0 %v288, 19
        %v486 = vpop.permute.xlu0 %485
        %487 = vrot.lane.b32.xlu0 %v289, 19
        %v488 = vpop.permute.xlu0 %487
        %489 = vrot.lane.b32.xlu0 %v290, 19
        %v490 = vpop.permute.xlu0 %489
        %491 = vrot.lane.b32.xlu0 %v291, 19
        %v492 = vpop.permute.xlu0 %491
        %vm493 = vcmask 154624
        %v494 = vsel %vm493, %v484, %v486
        %v495 = vsel %vm493, %v486, %v488
        %v496 = vsel %vm493, %v488, %v490
        %v497 = vsel %vm493, %v490, %v492
        %v503 = vsel %vm322, %v293, 0
        %v506 = vsel %vm322, %v294, 0
        %508 = vmatprep.subr.mxu0 %v495
        %509 = vmatpush1.msra.mxu0 %v494
        %510 = vmatprep.subr.mxu0 0.0
        %511 = vmatpush1.msra.mxu0 0.0
        %512 = vmatprep.subr.mxu0 0.0
        %513 = vmatpush1.msra.mxu0 0.0
        %514 = vmatprep.subr.mxu0 0.0
        %515 = vmatpush1.msra.mxu0 0.0
        %516 = vmatprep.subr.mxu0 0.0
        %517 = vmatpush1.msra.mxu0 0.0
        %518 = vmatprep.subr.mxu0 0.0
        %519 = vmatpush1.msra.mxu0 0.0
        %520 = vmatprep.subr.mxu0 0.0
        %521 = vmatpush1.msra.mxu0 0.0
        %522 = vmatprep.subr.mxu0 0.0
        %523 = vmatpush1.msra.mxu0 0.0
        %524 = vmatprep.subr.mxu0 0.0
        %525 = vmatpush1.msra.mxu0 0.0
        %526 = vmatprep.subr.mxu0 0.0
        %527 = vmatpush1.msra.mxu0 0.0
        %528 = vmatprep.subr.mxu0 0.0
        %529 = vmatpush1.msra.mxu0 0.0
        %530 = vmatprep.subr.mxu0 0.0
        %531 = vmatpush1.msra.mxu0 0.0
        %532 = vmatprep.subr.mxu0 0.0
        %533 = vmatpush1.msra.mxu0 0.0
        %534 = vmatprep.subr.mxu0 0.0
        %535 = vmatpush1.msra.mxu0 0.0
        %536 = vmatprep.subr.mxu0 0.0
        %537 = vmatpush1.msra.mxu0 0.0
        %538 = vmatprep.subr.mxu0 0.0
        %539 = vmatpush1.msra.mxu0 0.0
        %540 = vmatprep.subr.mxu0 0.0
        %541 = vmatpush1.msra.mxu0 0.0
        %542 = vmatprep.subr.mxu0 0.0
        %543 = vmatpush1.msra.mxu0 0.0
        %544 = vmatprep.subr.mxu0 0.0
        %545 = vmatpush1.msra.mxu0 0.0
        %546 = vmatprep.subr.mxu0 0.0
        %547 = vmatpush1.msra.mxu0 0.0
        %548 = vmatprep.subr.mxu0 0.0
        %549 = vmatpush1.msra.mxu0 0.0
        %550 = vmatprep.subr.mxu0 0.0
        %551 = vmatpush1.msra.mxu0 0.0
        %552 = vmatprep.subr.mxu0 0.0
        %553 = vmatpush1.msra.mxu0 0.0
        %554 = vmatprep.subr.mxu0 0.0
        %555 = vmatpush1.msra.mxu0 0.0
        %556 = vmatprep.subr.mxu0 0.0
        %557 = vmatpush1.msra.mxu0 0.0
        %558 = vmatprep.subr.mxu0 0.0
        %559 = vmatpush1.msra.mxu0 0.0
        %560 = vmatprep.subr.mxu0 0.0
        %561 = vmatpush1.msra.mxu0 0.0
        %562 = vmatprep.subr.mxu0 0.0
        %563 = vmatpush1.msra.mxu0 0.0
        %564 = vmatprep.subr.mxu0 0.0
        %565 = vmatpush1.msra.mxu0 0.0
        %566 = vmatprep.subr.mxu0 0.0
        %567 = vmatpush1.msra.mxu0 0.0
        %568 = vmatprep.subr.mxu0 0.0
        %569 = vmatpush1.msra.mxu0 0.0
        %570 = vmatprep.subr.mxu0 0.0
        %571 = vmatpush1.msra.mxu0 0.0
        %572 = vmatprep.mubr.f32.mxu0 0.0
        %573 = vmatmul.mubr.f32.gmra.mrb[0].mxu0 %v503
        %v574 = vpop.f32.mrb[0].mxu0
        %v575 = vadd.f32 %v396, %v574
        %v576 = vpop.f32.mrb[0].mxu0
        %v577 = vadd.f32 %v398, %v576
        %578 = vmatprep.mubr.f32.mxu0 0.0
        %579 = vmatmul.mubr.f32.gmra.mrb[0].mxu0 %v506
        %v580 = vpop.f32.mrb[0].mxu0
        %v581 = vadd.f32 %v402, %v580
        %v582 = vpop.f32.mrb[0].mxu0
        %v583 = vadd.f32 %v404, %v582
        %584 = vdwg.mxu0
        %585 = vmatprep.subr.mxu0 %v497
        %586 = vmatpush1.msra.mxu0 %v496
        %587 = vmatprep.subr.mxu0 0.0
        %588 = vmatpush1.msra.mxu0 0.0
        %589 = vmatprep.subr.mxu0 0.0
        %590 = vmatpush1.msra.mxu0 0.0
        %591 = vmatprep.subr.mxu0 0.0
        %592 = vmatpush1.msra.mxu0 0.0
        %593 = vmatprep.subr.mxu0 0.0
        %594 = vmatpush1.msra.mxu0 0.0
        %595 = vmatprep.subr.mxu0 0.0
        %596 = vmatpush1.msra.mxu0 0.0
        %597 = vmatprep.subr.mxu0 0.0
        %598 = vmatpush1.msra.mxu0 0.0
        %599 = vmatprep.subr.mxu0 0.0
        %600 = vmatpush1.msra.mxu0 0.0
        %601 = vmatprep.subr.mxu0 0.0
        %602 = vmatpush1.msra.mxu0 0.0
        %603 = vmatprep.subr.mxu0 0.0
        %604 = vmatpush1.msra.mxu0 0.0
        %605 = vmatprep.subr.mxu0 0.0
        %606 = vmatpush1.msra.mxu0 0.0
        %607 = vmatprep.subr.mxu0 0.0
        %608 = vmatpush1.msra.mxu0 0.0
        %609 = vmatprep.subr.mxu0 0.0
        %610 = vmatpush1.msra.mxu0 0.0
        %611 = vmatprep.subr.mxu0 0.0
        %612 = vmatpush1.msra.mxu0 0.0
        %613 = vmatprep.subr.mxu0 0.0
        %614 = vmatpush1.msra.mxu0 0.0
        %615 = vmatprep.subr.mxu0 0.0
        %616 = vmatpush1.msra.mxu0 0.0
        %617 = vmatprep.subr.mxu0 0.0
        %618 = vmatpush1.msra.mxu0 0.0
        %619 = vmatprep.subr.mxu0 0.0
        %620 = vmatpush1.msra.mxu0 0.0
        %621 = vmatprep.subr.mxu0 0.0
        %622 = vmatpush1.msra.mxu0 0.0
        %623 = vmatprep.subr.mxu0 0.0
        %624 = vmatpush1.msra.mxu0 0.0
        %625 = vmatprep.subr.mxu0 0.0
        %626 = vmatpush1.msra.mxu0 0.0
        %627 = vmatprep.subr.mxu0 0.0
        %628 = vmatpush1.msra.mxu0 0.0
        %629 = vmatprep.subr.mxu0 0.0
        %630 = vmatpush1.msra.mxu0 0.0
        %631 = vmatprep.subr.mxu0 0.0
        %632 = vmatpush1.msra.mxu0 0.0
        %633 = vmatprep.subr.mxu0 0.0
        %634 = vmatpush1.msra.mxu0 0.0
        %635 = vmatprep.subr.mxu0 0.0
        %636 = vmatpush1.msra.mxu0 0.0
        %637 = vmatprep.subr.mxu0 0.0
        %638 = vmatpush1.msra.mxu0 0.0
        %639 = vmatprep.subr.mxu0 0.0
        %640 = vmatpush1.msra.mxu0 0.0
        %641 = vmatprep.subr.mxu0 0.0
        %642 = vmatpush1.msra.mxu0 0.0
        %643 = vmatprep.subr.mxu0 0.0
        %644 = vmatpush1.msra.mxu0 0.0
        %645 = vmatprep.subr.mxu0 0.0
        %646 = vmatpush1.msra.mxu0 0.0
        %647 = vmatprep.subr.mxu0 0.0
        %648 = vmatpush1.msra.mxu0 0.0
        %649 = vmatprep.mubr.f32.mxu0 0.0
        %650 = vmatmul.mubr.f32.gmra.mrb[0].mxu0 %v503
        %v651 = vpop.f32.mrb[0].mxu0
        %v652 = vadd.f32 %v473, %v651
        %v653 = vpop.f32.mrb[0].mxu0
        %v654 = vadd.f32 %v475, %v653
        %655 = vmatprep.mubr.f32.mxu0 0.0
        %656 = vmatmul.mubr.f32.gmra.mrb[0].mxu0 %v506
        %v657 = vpop.f32.mrb[0].mxu0
        %v658 = vadd.f32 %v479, %v657
        %v659 = vpop.f32.mrb[0].mxu0
        %v660 = vadd.f32 %v481, %v659
        %661 = vdwg.mxu0
        %s662 = scalar_lea.vmem %s1, 32
        %v663 = vld [vmem:[%s662] sm:$0xff]
        %v664 = vld [vmem:[%s662 + $0x8] sm:$0xff]
        %665 = vrot.lane.b32.xlu0 %v287, 17
        %v666 = vpop.permute.xlu0 %665
        %667 = vrot.lane.b32.xlu0 %v288, 17
        %v668 = vpop.permute.xlu0 %667
        %669 = vrot.lane.b32.xlu0 %v289, 17
        %v670 = vpop.permute.xlu0 %669
        %671 = vrot.lane.b32.xlu0 %v290, 17
        %v672 = vpop.permute.xlu0 %671
        %673 = vrot.lane.b32.xlu0 %v291, 17
        %v674 = vpop.permute.xlu0 %673
        %vm675 = vcmask 138240
        %v676 = vsel %vm675, %v666, %v668
        %v677 = vsel %vm675, %v668, %v670
        %v678 = vsel %vm675, %v670, %v672
        %v679 = vsel %vm675, %v672, %v674
        %v685 = vsel %vm322, %v663, 0
        %v688 = vsel %vm322, %v664, 0
        %690 = vmatprep.subr.mxu0 %v677
        %691 = vmatpush1.msra.mxu0 %v676
        %692 = vmatprep.subr.mxu0 0.0
        %693 = vmatpush1.msra.mxu0 0.0
        %694 = vmatprep.subr.mxu0 0.0
        %695 = vmatpush1.msra.mxu0 0.0
        %696 = vmatprep.subr.mxu0 0.0
        %697 = vmatpush1.msra.mxu0 0.0
        %698 = vmatprep.subr.mxu0 0.0
        %699 = vmatpush1.msra.mxu0 0.0
        %700 = vmatprep.subr.mxu0 0.0
        %701 = vmatpush1.msra.mxu0 0.0
        %702 = vmatprep.subr.mxu0 0.0
        %703 = vmatpush1.msra.mxu0 0.0
        %704 = vmatprep.subr.mxu0 0.0
        %705 = vmatpush1.msra.mxu0 0.0
        %706 = vmatprep.subr.mxu0 0.0
        %707 = vmatpush1.msra.mxu0 0.0
        %708 = vmatprep.subr.mxu0 0.0
        %709 = vmatpush1.msra.mxu0 0.0
        %710 = vmatprep.subr.mxu0 0.0
        %711 = vmatpush1.msra.mxu0 0.0
        %712 = vmatprep.subr.mxu0 0.0
        %713 = vmatpush1.msra.mxu0 0.0
        %714 = vmatprep.subr.mxu0 0.0
        %715 = vmatpush1.msra.mxu0 0.0
        %716 = vmatprep.subr.mxu0 0.0
        %717 = vmatpush1.msra.mxu0 0.0
        %718 = vmatprep.subr.mxu0 0.0
        %719 = vmatpush1.msra.mxu0 0.0
        %720 = vmatprep.subr.mxu0 0.0
        %721 = vmatpush1.msra.mxu0 0.0
        %722 = vmatprep.subr.mxu0 0.0
        %723 = vmatpush1.msra.mxu0 0.0
        %724 = vmatprep.subr.mxu0 0.0
        %725 = vmatpush1.msra.mxu0 0.0
        %726 = vmatprep.subr.mxu0 0.0
        %727 = vmatpush1.msra.mxu0 0.0
        %728 = vmatprep.subr.mxu0 0.0
        %729 = vmatpush1.msra.mxu0 0.0
        %730 = vmatprep.subr.mxu0 0.0
        %731 = vmatpush1.msra.mxu0 0.0
        %732 = vmatprep.subr.mxu0 0.0
        %733 = vmatpush1.msra.mxu0 0.0
        %734 = vmatprep.subr.mxu0 0.0
        %735 = vmatpush1.msra.mxu0 0.0
        %736 = vmatprep.subr.mxu0 0.0
        %737 = vmatpush1.msra.mxu0 0.0
        %738 = vmatprep.subr.mxu0 0.0
        %739 = vmatpush1.msra.mxu0 0.0
        %740 = vmatprep.subr.mxu0 0.0
        %741 = vmatpush1.msra.mxu0 0.0
        %742 = vmatprep.subr.mxu0 0.0
        %743 = vmatpush1.msra.mxu0 0.0
        %744 = vmatprep.subr.mxu0 0.0
        %745 = vmatpush1.msra.mxu0 0.0
        %746 = vmatprep.subr.mxu0 0.0
        %747 = vmatpush1.msra.mxu0 0.0
        %748 = vmatprep.subr.mxu0 0.0
        %749 = vmatpush1.msra.mxu0 0.0
        %750 = vmatprep.subr.mxu0 0.0
        %751 = vmatpush1.msra.mxu0 0.0
        %752 = vmatprep.subr.mxu0 0.0
        %753 = vmatpush1.msra.mxu0 0.0
        %754 = vmatprep.mubr.f32.mxu0 0.0
        %755 = vmatmul.mubr.f32.gmra.mrb[0].mxu0 %v685
        %v756 = vpop.f32.mrb[0].mxu0
        %v757 = vadd.f32 0.0, %v756
        %v758 = vpop.f32.mrb[0].mxu0
        %v759 = vadd.f32 0.0, %v758
        %760 = vmatprep.mubr.f32.mxu0 0.0
        %761 = vmatmul.mubr.f32.gmra.mrb[0].mxu0 %v688
        %v762 = vpop.f32.mrb[0].mxu0
        %v763 = vadd.f32 0.0, %v762
        %v764 = vpop.f32.mrb[0].mxu0
        %v765 = vadd.f32 0.0, %v764
        %766 = vdwg.mxu0
        %767 = vmatprep.subr.mxu0 %v679
        %768 = vmatpush1.msra.mxu0 %v678
        %769 = vmatprep.subr.mxu0 0.0
        %770 = vmatpush1.msra.mxu0 0.0
        %771 = vmatprep.subr.mxu0 0.0
        %772 = vmatpush1.msra.mxu0 0.0
        %773 = vmatprep.subr.mxu0 0.0
        %774 = vmatpush1.msra.mxu0 0.0
        %775 = vmatprep.subr.mxu0 0.0
        %776 = vmatpush1.msra.mxu0 0.0
        %777 = vmatprep.subr.mxu0 0.0
        %778 = vmatpush1.msra.mxu0 0.0
        %779 = vmatprep.subr.mxu0 0.0
        %780 = vmatpush1.msra.mxu0 0.0
        %781 = vmatprep.subr.mxu0 0.0
        %782 = vmatpush1.msra.mxu0 0.0
        %783 = vmatprep.subr.mxu0 0.0
        %784 = vmatpush1.msra.mxu0 0.0
        %785 = vmatprep.subr.mxu0 0.0
        %786 = vmatpush1.msra.mxu0 0.0
        %787 = vmatprep.subr.mxu0 0.0
        %788 = vmatpush1.msra.mxu0 0.0
        %789 = vmatprep.subr.mxu0 0.0
        %790 = vmatpush1.msra.mxu0 0.0
        %791 = vmatprep.subr.mxu0 0.0
        %792 = vmatpush1.msra.mxu0 0.0
        %793 = vmatprep.subr.mxu0 0.0
        %794 = vmatpush1.msra.mxu0 0.0
        %795 = vmatprep.subr.mxu0 0.0
        %796 = vmatpush1.msra.mxu0 0.0
        %797 = vmatprep.subr.mxu0 0.0
        %798 = vmatpush1.msra.mxu0 0.0
        %799 = vmatprep.subr.mxu0 0.0
        %800 = vmatpush1.msra.mxu0 0.0
        %801 = vmatprep.subr.mxu0 0.0
        %802 = vmatpush1.msra.mxu0 0.0
        %803 = vmatprep.subr.mxu0 0.0
        %804 = vmatpush1.msra.mxu0 0.0
        %805 = vmatprep.subr.mxu0 0.0
        %806 = vmatpush1.msra.mxu0 0.0
        %807 = vmatprep.subr.mxu0 0.0
        %808 = vmatpush1.msra.mxu0 0.0
        %809 = vmatprep.subr.mxu0 0.0
        %810 = vmatpush1.msra.mxu0 0.0
        %811 = vmatprep.subr.mxu0 0.0
        %812 = vmatpush1.msra.mxu0 0.0
        %813 = vmatprep.subr.mxu0 0.0
        %814 = vmatpush1.msra.mxu0 0.0
        %815 = vmatprep.subr.mxu0 0.0
        %816 = vmatpush1.msra.mxu0 0.0
        %817 = vmatprep.subr.mxu0 0.0
        %818 = vmatpush1.msra.mxu0 0.0
        %819 = vmatprep.subr.mxu0 0.0
        %820 = vmatpush1.msra.mxu0 0.0
        %821 = vmatprep.subr.mxu0 0.0
        %822 = vmatpush1.msra.mxu0 0.0
        %823 = vmatprep.subr.mxu0 0.0
        %824 = vmatpush1.msra.mxu0 0.0
        %825 = vmatprep.subr.mxu0 0.0
        %826 = vmatpush1.msra.mxu0 0.0
        %827 = vmatprep.subr.mxu0 0.0
        %828 = vmatpush1.msra.mxu0 0.0
        %829 = vmatprep.subr.mxu0 0.0
        %830 = vmatpush1.msra.mxu0 0.0
        %831 = vmatprep.mubr.f32.mxu0 0.0
        %832 = vmatmul.mubr.f32.gmra.mrb[0].mxu0 %v685
        %v833 = vpop.f32.mrb[0].mxu0
        %v834 = vadd.f32 0.0, %v833
        %v835 = vpop.f32.mrb[0].mxu0
        %v836 = vadd.f32 0.0, %v835
        %837 = vmatprep.mubr.f32.mxu0 0.0
        %838 = vmatmul.mubr.f32.gmra.mrb[0].mxu0 %v688
        %v839 = vpop.f32.mrb[0].mxu0
        %v840 = vadd.f32 0.0, %v839
        %v841 = vpop.f32.mrb[0].mxu0
        %v842 = vadd.f32 0.0, %v841
        %843 = vdwg.mxu0
        %v844 = vadd.f32 %v575, %v757
        %v845 = vadd.f32 %v577, %v759
        %v846 = vadd.f32 %v652, %v834
        %v847 = vadd.f32 %v654, %v836
        %v848 = vadd.f32 %v581, %v763
        %v849 = vadd.f32 %v583, %v765
        %v850 = vadd.f32 %v658, %v840
        %v851 = vadd.f32 %v660, %v842
        %s852 = scalar_lea.vmem %s1, 48
        %v853 = vld [vmem:[%s852] sm:$0xff]
        %v854 = vld [vmem:[%s852 + $0x8] sm:$0xff]
        %855 = vrot.lane.b32.xlu0 %v287, 1
        %v856 = vpop.permute.xlu0 %855
        %857 = vrot.lane.b32.xlu0 %v288, 1
        %v858 = vpop.permute.xlu0 %857
        %859 = vrot.lane.b32.xlu0 %v289, 1
        %v860 = vpop.permute.xlu0 %859
        %861 = vrot.lane.b32.xlu0 %v290, 1
        %v862 = vpop.permute.xlu0 %861
        %863 = vrot.lane.b32.xlu0 %v291, 1
        %v864 = vpop.permute.xlu0 %863
        %vm865 = vcmask 7168
        %v866 = vsel %vm865, %v856, %v858
        %v867 = vsel %vm865, %v858, %v860
        %v868 = vsel %vm865, %v860, %v862
        %v869 = vsel %vm865, %v862, %v864
        %v875 = vsel %vm322, %v853, 0
        %v878 = vsel %vm322, %v854, 0
        %880 = vmatprep.subr.mxu0 %v867
        %881 = vmatpush1.msra.mxu0 %v866
        %882 = vmatprep.subr.mxu0 0.0
        %883 = vmatpush1.msra.mxu0 0.0
        %884 = vmatprep.subr.mxu0 0.0
        %885 = vmatpush1.msra.mxu0 0.0
        %886 = vmatprep.subr.mxu0 0.0
        %887 = vmatpush1.msra.mxu0 0.0
        %888 = vmatprep.subr.mxu0 0.0
        %889 = vmatpush1.msra.mxu0 0.0
        %890 = vmatprep.subr.mxu0 0.0
        %891 = vmatpush1.msra.mxu0 0.0
        %892 = vmatprep.subr.mxu0 0.0
        %893 = vmatpush1.msra.mxu0 0.0
        %894 = vmatprep.subr.mxu0 0.0
        %895 = vmatpush1.msra.mxu0 0.0
        %896 = vmatprep.subr.mxu0 0.0
        %897 = vmatpush1.msra.mxu0 0.0
        %898 = vmatprep.subr.mxu0 0.0
        %899 = vmatpush1.msra.mxu0 0.0
        %900 = vmatprep.subr.mxu0 0.0
        %901 = vmatpush1.msra.mxu0 0.0
        %902 = vmatprep.subr.mxu0 0.0
        %903 = vmatpush1.msra.mxu0 0.0
        %904 = vmatprep.subr.mxu0 0.0
        %905 = vmatpush1.msra.mxu0 0.0
        %906 = vmatprep.subr.mxu0 0.0
        %907 = vmatpush1.msra.mxu0 0.0
        %908 = vmatprep.subr.mxu0 0.0
        %909 = vmatpush1.msra.mxu0 0.0
        %910 = vmatprep.subr.mxu0 0.0
        %911 = vmatpush1.msra.mxu0 0.0
        %912 = vmatprep.subr.mxu0 0.0
        %913 = vmatpush1.msra.mxu0 0.0
        %914 = vmatprep.subr.mxu0 0.0
        %915 = vmatpush1.msra.mxu0 0.0
        %916 = vmatprep.subr.mxu0 0.0
        %917 = vmatpush1.msra.mxu0 0.0
        %918 = vmatprep.subr.mxu0 0.0
        %919 = vmatpush1.msra.mxu0 0.0
        %920 = vmatprep.subr.mxu0 0.0
        %921 = vmatpush1.msra.mxu0 0.0
        %922 = vmatprep.subr.mxu0 0.0
        %923 = vmatpush1.msra.mxu0 0.0
        %924 = vmatprep.subr.mxu0 0.0
        %925 = vmatpush1.msra.mxu0 0.0
        %926 = vmatprep.subr.mxu0 0.0
        %927 = vmatpush1.msra.mxu0 0.0
        %928 = vmatprep.subr.mxu0 0.0
        %929 = vmatpush1.msra.mxu0 0.0
        %930 = vmatprep.subr.mxu0 0.0
        %931 = vmatpush1.msra.mxu0 0.0
        %932 = vmatprep.subr.mxu0 0.0
        %933 = vmatpush1.msra.mxu0 0.0
        %934 = vmatprep.subr.mxu0 0.0
        %935 = vmatpush1.msra.mxu0 0.0
        %936 = vmatprep.subr.mxu0 0.0
        %937 = vmatpush1.msra.mxu0 0.0
        %938 = vmatprep.subr.mxu0 0.0
        %939 = vmatpush1.msra.mxu0 0.0
        %940 = vmatprep.subr.mxu0 0.0
        %941 = vmatpush1.msra.mxu0 0.0
        %942 = vmatprep.subr.mxu0 0.0
        %943 = vmatpush1.msra.mxu0 0.0
        %944 = vmatprep.mubr.f32.mxu0 0.0
        %945 = vmatmul.mubr.f32.gmra.mrb[0].mxu0 %v875
        %v946 = vpop.f32.mrb[0].mxu0
        %v947 = vadd.f32 0.0, %v946
        %v948 = vpop.f32.mrb[0].mxu0
        %v949 = vadd.f32 0.0, %v948
        %950 = vmatprep.mubr.f32.mxu0 0.0
        %951 = vmatmul.mubr.f32.gmra.mrb[0].mxu0 %v878
        %v952 = vpop.f32.mrb[0].mxu0
        %v953 = vadd.f32 0.0, %v952
        %v954 = vpop.f32.mrb[0].mxu0
        %v955 = vadd.f32 0.0, %v954
        %956 = vdwg.mxu0
        %957 = vmatprep.subr.mxu0 %v869
        %958 = vmatpush1.msra.mxu0 %v868
        %959 = vmatprep.subr.mxu0 0.0
        %960 = vmatpush1.msra.mxu0 0.0
        %961 = vmatprep.subr.mxu0 0.0
        %962 = vmatpush1.msra.mxu0 0.0
        %963 = vmatprep.subr.mxu0 0.0
        %964 = vmatpush1.msra.mxu0 0.0
        %965 = vmatprep.subr.mxu0 0.0
        %966 = vmatpush1.msra.mxu0 0.0
        %967 = vmatprep.subr.mxu0 0.0
        %968 = vmatpush1.msra.mxu0 0.0
        %969 = vmatprep.subr.mxu0 0.0
        %970 = vmatpush1.msra.mxu0 0.0
        %971 = vmatprep.subr.mxu0 0.0
        %972 = vmatpush1.msra.mxu0 0.0
        %973 = vmatprep.subr.mxu0 0.0
        %974 = vmatpush1.msra.mxu0 0.0
        %975 = vmatprep.subr.mxu0 0.0
        %976 = vmatpush1.msra.mxu0 0.0
        %977 = vmatprep.subr.mxu0 0.0
        %978 = vmatpush1.msra.mxu0 0.0
        %979 = vmatprep.subr.mxu0 0.0
        %980 = vmatpush1.msra.mxu0 0.0
        %981 = vmatprep.subr.mxu0 0.0
        %982 = vmatpush1.msra.mxu0 0.0
        %983 = vmatprep.subr.mxu0 0.0
        %984 = vmatpush1.msra.mxu0 0.0
        %985 = vmatprep.subr.mxu0 0.0
        %986 = vmatpush1.msra.mxu0 0.0
        %987 = vmatprep.subr.mxu0 0.0
        %988 = vmatpush1.msra.mxu0 0.0
        %989 = vmatprep.subr.mxu0 0.0
        %990 = vmatpush1.msra.mxu0 0.0
        %991 = vmatprep.subr.mxu0 0.0
        %992 = vmatpush1.msra.mxu0 0.0
        %993 = vmatprep.subr.mxu0 0.0
        %994 = vmatpush1.msra.mxu0 0.0
        %995 = vmatprep.subr.mxu0 0.0
        %996 = vmatpush1.msra.mxu0 0.0
        %997 = vmatprep.subr.mxu0 0.0
        %998 = vmatpush1.msra.mxu0 0.0
        %999 = vmatprep.subr.mxu0 0.0
        %1000 = vmatpush1.msra.mxu0 0.0
        %1001 = vmatprep.subr.mxu0 0.0
        %1002 = vmatpush1.msra.mxu0 0.0
        %1003 = vmatprep.subr.mxu0 0.0
        %1004 = vmatpush1.msra.mxu0 0.0
        %1005 = vmatprep.subr.mxu0 0.0
        %1006 = vmatpush1.msra.mxu0 0.0
        %1007 = vmatprep.subr.mxu0 0.0
        %1008 = vmatpush1.msra.mxu0 0.0
        %1009 = vmatprep.subr.mxu0 0.0
        %1010 = vmatpush1.msra.mxu0 0.0
        %1011 = vmatprep.subr.mxu0 0.0
        %1012 = vmatpush1.msra.mxu0 0.0
        %1013 = vmatprep.subr.mxu0 0.0
        %1014 = vmatpush1.msra.mxu0 0.0
        %1015 = vmatprep.subr.mxu0 0.0
        %1016 = vmatpush1.msra.mxu0 0.0
        %1017 = vmatprep.subr.mxu0 0.0
        %1018 = vmatpush1.msra.mxu0 0.0
        %1019 = vmatprep.subr.mxu0 0.0
        %1020 = vmatpush1.msra.mxu0 0.0
        %1021 = vmatprep.mubr.f32.mxu0 0.0
        %1022 = vmatmul.mubr.f32.gmra.mrb[0].mxu0 %v875
        %v1023 = vpop.f32.mrb[0].mxu0
        %v1024 = vadd.f32 0.0, %v1023
        %v1025 = vpop.f32.mrb[0].mxu0
        %v1026 = vadd.f32 0.0, %v1025
        %1027 = vmatprep.mubr.f32.mxu0 0.0
        %1028 = vmatmul.mubr.f32.gmra.mrb[0].mxu0 %v878
        %v1029 = vpop.f32.mrb[0].mxu0
        %v1030 = vadd.f32 0.0, %v1029
        %v1031 = vpop.f32.mrb[0].mxu0
        %v1032 = vadd.f32 0.0, %v1031
        %1033 = vdwg.mxu0
        %v1034 = vadd.f32 %v844, %v947
        %v1035 = vadd.f32 %v845, %v949
        %v1036 = vadd.f32 %v846, %v1024
        %v1037 = vadd.f32 %v847, %v1026
        %v1038 = vadd.f32 %v848, %v953
        %v1039 = vadd.f32 %v849, %v955
        %v1040 = vadd.f32 %v850, %v1030
        %v1041 = vadd.f32 %v851, %v1032
        %s1042 = scalar_lea.vmem %s1, 64
        %v1043 = vld [vmem:[%s1042] sm:$0xff]
        %v1044 = vld [vmem:[%s1042 + $0x8] sm:$0xff]
        %v1046 = vsel %vm322, %v1043, 0
        %v1049 = vsel %vm322, %v1044, 0
        %1051 = vmatprep.subr.mxu0 %v289
        %1052 = vmatpush1.msra.mxu0 %v288
        %1053 = vmatprep.subr.mxu0 0.0
        %1054 = vmatpush1.msra.mxu0 0.0
        %1055 = vmatprep.subr.mxu0 0.0
        %1056 = vmatpush1.msra.mxu0 0.0
        %1057 = vmatprep.subr.mxu0 0.0
        %1058 = vmatpush1.msra.mxu0 0.0
        %1059 = vmatprep.subr.mxu0 0.0
        %1060 = vmatpush1.msra.mxu0 0.0
        %1061 = vmatprep.subr.mxu0 0.0
        %1062 = vmatpush1.msra.mxu0 0.0
        %1063 = vmatprep.subr.mxu0 0.0
        %1064 = vmatpush1.msra.mxu0 0.0
        %1065 = vmatprep.subr.mxu0 0.0
        %1066 = vmatpush1.msra.mxu0 0.0
        %1067 = vmatprep.subr.mxu0 0.0
        %1068 = vmatpush1.msra.mxu0 0.0
        %1069 = vmatprep.subr.mxu0 0.0
        %1070 = vmatpush1.msra.mxu0 0.0
        %1071 = vmatprep.subr.mxu0 0.0
        %1072 = vmatpush1.msra.mxu0 0.0
        %1073 = vmatprep.subr.mxu0 0.0
        %1074 = vmatpush1.msra.mxu0 0.0
        %1075 = vmatprep.subr.mxu0 0.0
        %1076 = vmatpush1.msra.mxu0 0.0
        %1077 = vmatprep.subr.mxu0 0.0
        %1078 = vmatpush1.msra.mxu0 0.0
        %1079 = vmatprep.subr.mxu0 0.0
        %1080 = vmatpush1.msra.mxu0 0.0
        %1081 = vmatprep.subr.mxu0 0.0
        %1082 = vmatpush1.msra.mxu0 0.0
        %1083 = vmatprep.subr.mxu0 0.0
        %1084 = vmatpush1.msra.mxu0 0.0
        %1085 = vmatprep.subr.mxu0 0.0
        %1086 = vmatpush1.msra.mxu0 0.0
        %1087 = vmatprep.subr.mxu0 0.0
        %1088 = vmatpush1.msra.mxu0 0.0
        %1089 = vmatprep.subr.mxu0 0.0
        %1090 = vmatpush1.msra.mxu0 0.0
        %1091 = vmatprep.subr.mxu0 0.0
        %1092 = vmatpush1.msra.mxu0 0.0
        %1093 = vmatprep.subr.mxu0 0.0
        %1094 = vmatpush1.msra.mxu0 0.0
        %1095 = vmatprep.subr.mxu0 0.0
        %1096 = vmatpush1.msra.mxu0 0.0
        %1097 = vmatprep.subr.mxu0 0.0
        %1098 = vmatpush1.msra.mxu0 0.0
        %1099 = vmatprep.subr.mxu0 0.0
        %1100 = vmatpush1.msra.mxu0 0.0
        %1101 = vmatprep.subr.mxu0 0.0
        %1102 = vmatpush1.msra.mxu0 0.0
        %1103 = vmatprep.subr.mxu0 0.0
        %1104 = vmatpush1.msra.mxu0 0.0
        %1105 = vmatprep.subr.mxu0 0.0
        %1106 = vmatpush1.msra.mxu0 0.0
        %1107 = vmatprep.subr.mxu0 0.0
        %1108 = vmatpush1.msra.mxu0 0.0
        %1109 = vmatprep.subr.mxu0 0.0
        %1110 = vmatpush1.msra.mxu0 0.0
        %1111 = vmatprep.subr.mxu0 0.0
        %1112 = vmatpush1.msra.mxu0 0.0
        %1113 = vmatprep.subr.mxu0 0.0
        %1114 = vmatpush1.msra.mxu0 0.0
        %1115 = vmatprep.mubr.f32.mxu0 0.0
        %1116 = vmatmul.mubr.f32.gmra.mrb[0].mxu0 %v1046
        %v1117 = vpop.f32.mrb[0].mxu0
        %v1118 = vadd.f32 0.0, %v1117
        %v1119 = vpop.f32.mrb[0].mxu0
        %v1120 = vadd.f32 0.0, %v1119
        %1121 = vmatprep.mubr.f32.mxu0 0.0
        %1122 = vmatmul.mubr.f32.gmra.mrb[0].mxu0 %v1049
        %v1123 = vpop.f32.mrb[0].mxu0
        %v1124 = vadd.f32 0.0, %v1123
        %v1125 = vpop.f32.mrb[0].mxu0
        %v1126 = vadd.f32 0.0, %v1125
        %1127 = vdwg.mxu0
        %1128 = vmatprep.subr.mxu0 %v291
        %1129 = vmatpush1.msra.mxu0 %v290
        %1130 = vmatprep.subr.mxu0 0.0
        %1131 = vmatpush1.msra.mxu0 0.0
        %1132 = vmatprep.subr.mxu0 0.0
        %1133 = vmatpush1.msra.mxu0 0.0
        %1134 = vmatprep.subr.mxu0 0.0
        %1135 = vmatpush1.msra.mxu0 0.0
        %1136 = vmatprep.subr.mxu0 0.0
        %1137 = vmatpush1.msra.mxu0 0.0
        %1138 = vmatprep.subr.mxu0 0.0
        %1139 = vmatpush1.msra.mxu0 0.0
        %1140 = vmatprep.subr.mxu0 0.0
        %1141 = vmatpush1.msra.mxu0 0.0
        %1142 = vmatprep.subr.mxu0 0.0
        %1143 = vmatpush1.msra.mxu0 0.0
        %1144 = vmatprep.subr.mxu0 0.0
        %1145 = vmatpush1.msra.mxu0 0.0
        %1146 = vmatprep.subr.mxu0 0.0
        %1147 = vmatpush1.msra.mxu0 0.0
        %1148 = vmatprep.subr.mxu0 0.0
        %1149 = vmatpush1.msra.mxu0 0.0
        %1150 = vmatprep.subr.mxu0 0.0
        %1151 = vmatpush1.msra.mxu0 0.0
        %1152 = vmatprep.subr.mxu0 0.0
        %1153 = vmatpush1.msra.mxu0 0.0
        %1154 = vmatprep.subr.mxu0 0.0
        %1155 = vmatpush1.msra.mxu0 0.0
        %1156 = vmatprep.subr.mxu0 0.0
        %1157 = vmatpush1.msra.mxu0 0.0
        %1158 = vmatprep.subr.mxu0 0.0
        %1159 = vmatpush1.msra.mxu0 0.0
        %1160 = vmatprep.subr.mxu0 0.0
        %1161 = vmatpush1.msra.mxu0 0.0
        %1162 = vmatprep.subr.mxu0 0.0
        %1163 = vmatpush1.msra.mxu0 0.0
        %1164 = vmatprep.subr.mxu0 0.0
        %1165 = vmatpush1.msra.mxu0 0.0
        %1166 = vmatprep.subr.mxu0 0.0
        %1167 = vmatpush1.msra.mxu0 0.0
        %1168 = vmatprep.subr.mxu0 0.0
        %1169 = vmatpush1.msra.mxu0 0.0
        %1170 = vmatprep.subr.mxu0 0.0
        %1171 = vmatpush1.msra.mxu0 0.0
        %1172 = vmatprep.subr.mxu0 0.0
        %1173 = vmatpush1.msra.mxu0 0.0
        %1174 = vmatprep.subr.mxu0 0.0
        %1175 = vmatpush1.msra.mxu0 0.0
        %1176 = vmatprep.subr.mxu0 0.0
        %1177 = vmatpush1.msra.mxu0 0.0
        %1178 = vmatprep.subr.mxu0 0.0
        %1179 = vmatpush1.msra.mxu0 0.0
        %1180 = vmatprep.subr.mxu0 0.0
        %1181 = vmatpush1.msra.mxu0 0.0
        %1182 = vmatprep.subr.mxu0 0.0
        %1183 = vmatpush1.msra.mxu0 0.0
        %1184 = vmatprep.subr.mxu0 0.0
        %1185 = vmatpush1.msra.mxu0 0.0
        %1186 = vmatprep.subr.mxu0 0.0
        %1187 = vmatpush1.msra.mxu0 0.0
        %1188 = vmatprep.subr.mxu0 0.0
        %1189 = vmatpush1.msra.mxu0 0.0
        %1190 = vmatprep.subr.mxu0 0.0
        %1191 = vmatpush1.msra.mxu0 0.0
        %1192 = vmatprep.mubr.f32.mxu0 0.0
        %1193 = vmatmul.mubr.f32.gmra.mrb[0].mxu0 %v1046
        %v1194 = vpop.f32.mrb[0].mxu0
        %v1195 = vadd.f32 0.0, %v1194
        %v1196 = vpop.f32.mrb[0].mxu0
        %v1197 = vadd.f32 0.0, %v1196
        %1198 = vmatprep.mubr.f32.mxu0 0.0
        %1199 = vmatmul.mubr.f32.gmra.mrb[0].mxu0 %v1049
        %v1200 = vpop.f32.mrb[0].mxu0
        %v1201 = vadd.f32 0.0, %v1200
        %v1202 = vpop.f32.mrb[0].mxu0
        %v1203 = vadd.f32 0.0, %v1202
        %1204 = vdwg.mxu0
        %v1205 = vadd.f32 %v1034, %v1118
        %v1206 = vadd.f32 %v1035, %v1120
        %v1207 = vadd.f32 %v1036, %v1195
        %v1208 = vadd.f32 %v1037, %v1197
        %v1209 = vadd.f32 %v1038, %v1124
        %v1210 = vadd.f32 %v1039, %v1126
        %v1211 = vadd.f32 %v1040, %v1201
        %v1212 = vadd.f32 %v1041, %v1203
        %s1213 = scalar_lea.vmem %s1, 80
        %v1214 = vld [vmem:[%s1213] sm:$0xff]
        %v1215 = vld [vmem:[%s1213 + $0x8] sm:$0xff]
        %1217 = vrot.lane.b32.xlu0 %v288, 127
        %v1218 = vpop.permute.xlu0 %1217
        %1219 = vrot.lane.b32.xlu0 %v289, 127
        %v1220 = vpop.permute.xlu0 %1219
        %1221 = vrot.lane.b32.xlu0 %v290, 127
        %v1222 = vpop.permute.xlu0 %1221
        %1223 = vrot.lane.b32.xlu0 %v291, 127
        %v1224 = vpop.permute.xlu0 %1223
        %1225 = vrot.lane.b32.xlu0 %v292, 127
        %v1226 = vpop.permute.xlu0 %1225
        %vm1227 = vcmask 1039360
        %v1228 = vsel %vm1227, %v1218, %v1220
        %v1229 = vsel %vm1227, %v1220, %v1222
        %v1230 = vsel %vm1227, %v1222, %v1224
        %v1231 = vsel %vm1227, %v1224, %v1226
        %v1237 = vsel %vm322, %v1214, 0
        %v1240 = vsel %vm322, %v1215, 0
        %1242 = vmatprep.subr.mxu0 %v1229
        %1243 = vmatpush1.msra.mxu0 %v1228
        %1244 = vmatprep.subr.mxu0 0.0
        %1245 = vmatpush1.msra.mxu0 0.0
        %1246 = vmatprep.subr.mxu0 0.0
        %1247 = vmatpush1.msra.mxu0 0.0
        %1248 = vmatprep.subr.mxu0 0.0
        %1249 = vmatpush1.msra.mxu0 0.0
        %1250 = vmatprep.subr.mxu0 0.0
        %1251 = vmatpush1.msra.mxu0 0.0
        %1252 = vmatprep.subr.mxu0 0.0
        %1253 = vmatpush1.msra.mxu0 0.0
        %1254 = vmatprep.subr.mxu0 0.0
        %1255 = vmatpush1.msra.mxu0 0.0
        %1256 = vmatprep.subr.mxu0 0.0
        %1257 = vmatpush1.msra.mxu0 0.0
        %1258 = vmatprep.subr.mxu0 0.0
        %1259 = vmatpush1.msra.mxu0 0.0
        %1260 = vmatprep.subr.mxu0 0.0
        %1261 = vmatpush1.msra.mxu0 0.0
        %1262 = vmatprep.subr.mxu0 0.0
        %1263 = vmatpush1.msra.mxu0 0.0
        %1264 = vmatprep.subr.mxu0 0.0
        %1265 = vmatpush1.msra.mxu0 0.0
        %1266 = vmatprep.subr.mxu0 0.0
        %1267 = vmatpush1.msra.mxu0 0.0
        %1268 = vmatprep.subr.mxu0 0.0
        %1269 = vmatpush1.msra.mxu0 0.0
        %1270 = vmatprep.subr.mxu0 0.0
        %1271 = vmatpush1.msra.mxu0 0.0
        %1272 = vmatprep.subr.mxu0 0.0
        %1273 = vmatpush1.msra.mxu0 0.0
        %1274 = vmatprep.subr.mxu0 0.0
        %1275 = vmatpush1.msra.mxu0 0.0
        %1276 = vmatprep.subr.mxu0 0.0
        %1277 = vmatpush1.msra.mxu0 0.0
        %1278 = vmatprep.subr.mxu0 0.0
        %1279 = vmatpush1.msra.mxu0 0.0
        %1280 = vmatprep.subr.mxu0 0.0
        %1281 = vmatpush1.msra.mxu0 0.0
        %1282 = vmatprep.subr.mxu0 0.0
        %1283 = vmatpush1.msra.mxu0 0.0
        %1284 = vmatprep.subr.mxu0 0.0
        %1285 = vmatpush1.msra.mxu0 0.0
        %1286 = vmatprep.subr.mxu0 0.0
        %1287 = vmatpush1.msra.mxu0 0.0
        %1288 = vmatprep.subr.mxu0 0.0
        %1289 = vmatpush1.msra.mxu0 0.0
        %1290 = vmatprep.subr.mxu0 0.0
        %1291 = vmatpush1.msra.mxu0 0.0
        %1292 = vmatprep.subr.mxu0 0.0
        %1293 = vmatpush1.msra.mxu0 0.0
        %1294 = vmatprep.subr.mxu0 0.0
        %1295 = vmatpush1.msra.mxu0 0.0
        %1296 = vmatprep.subr.mxu0 0.0
        %1297 = vmatpush1.msra.mxu0 0.0
        %1298 = vmatprep.subr.mxu0 0.0
        %1299 = vmatpush1.msra.mxu0 0.0
        %1300 = vmatprep.subr.mxu0 0.0
        %1301 = vmatpush1.msra.mxu0 0.0
        %1302 = vmatprep.subr.mxu0 0.0
        %1303 = vmatpush1.msra.mxu0 0.0
        %1304 = vmatprep.subr.mxu0 0.0
        %1305 = vmatpush1.msra.mxu0 0.0
        %1306 = vmatprep.mubr.f32.mxu0 0.0
        %1307 = vmatmul.mubr.f32.gmra.mrb[0].mxu0 %v1237
        %v1308 = vpop.f32.mrb[0].mxu0
        %v1309 = vadd.f32 0.0, %v1308
        %v1310 = vpop.f32.mrb[0].mxu0
        %v1311 = vadd.f32 0.0, %v1310
        %1312 = vmatprep.mubr.f32.mxu0 0.0
        %1313 = vmatmul.mubr.f32.gmra.mrb[0].mxu0 %v1240
        %v1314 = vpop.f32.mrb[0].mxu0
        %v1315 = vadd.f32 0.0, %v1314
        %v1316 = vpop.f32.mrb[0].mxu0
        %v1317 = vadd.f32 0.0, %v1316
        %1318 = vdwg.mxu0
        %1319 = vmatprep.subr.mxu0 %v1231
        %1320 = vmatpush1.msra.mxu0 %v1230
        %1321 = vmatprep.subr.mxu0 0.0
        %1322 = vmatpush1.msra.mxu0 0.0
        %1323 = vmatprep.subr.mxu0 0.0
        %1324 = vmatpush1.msra.mxu0 0.0
        %1325 = vmatprep.subr.mxu0 0.0
        %1326 = vmatpush1.msra.mxu0 0.0
        %1327 = vmatprep.subr.mxu0 0.0
        %1328 = vmatpush1.msra.mxu0 0.0
        %1329 = vmatprep.subr.mxu0 0.0
        %1330 = vmatpush1.msra.mxu0 0.0
        %1331 = vmatprep.subr.mxu0 0.0
        %1332 = vmatpush1.msra.mxu0 0.0
        %1333 = vmatprep.subr.mxu0 0.0
        %1334 = vmatpush1.msra.mxu0 0.0
        %1335 = vmatprep.subr.mxu0 0.0
        %1336 = vmatpush1.msra.mxu0 0.0
        %1337 = vmatprep.subr.mxu0 0.0
        %1338 = vmatpush1.msra.mxu0 0.0
        %1339 = vmatprep.subr.mxu0 0.0
        %1340 = vmatpush1.msra.mxu0 0.0
        %1341 = vmatprep.subr.mxu0 0.0
        %1342 = vmatpush1.msra.mxu0 0.0
        %1343 = vmatprep.subr.mxu0 0.0
        %1344 = vmatpush1.msra.mxu0 0.0
        %1345 = vmatprep.subr.mxu0 0.0
        %1346 = vmatpush1.msra.mxu0 0.0
        %1347 = vmatprep.subr.mxu0 0.0
        %1348 = vmatpush1.msra.mxu0 0.0
        %1349 = vmatprep.subr.mxu0 0.0
        %1350 = vmatpush1.msra.mxu0 0.0
        %1351 = vmatprep.subr.mxu0 0.0
        %1352 = vmatpush1.msra.mxu0 0.0
        %1353 = vmatprep.subr.mxu0 0.0
        %1354 = vmatpush1.msra.mxu0 0.0
        %1355 = vmatprep.subr.mxu0 0.0
        %1356 = vmatpush1.msra.mxu0 0.0
        %1357 = vmatprep.subr.mxu0 0.0
        %1358 = vmatpush1.msra.mxu0 0.0
        %1359 = vmatprep.subr.mxu0 0.0
        %1360 = vmatpush1.msra.mxu0 0.0
        %1361 = vmatprep.subr.mxu0 0.0
        %1362 = vmatpush1.msra.mxu0 0.0
        %1363 = vmatprep.subr.mxu0 0.0
        %1364 = vmatpush1.msra.mxu0 0.0
        %1365 = vmatprep.subr.mxu0 0.0
        %1366 = vmatpush1.msra.mxu0 0.0
        %1367 = vmatprep.subr.mxu0 0.0
        %1368 = vmatpush1.msra.mxu0 0.0
        %1369 = vmatprep.subr.mxu0 0.0
        %1370 = vmatpush1.msra.mxu0 0.0
        %1371 = vmatprep.subr.mxu0 0.0
        %1372 = vmatpush1.msra.mxu0 0.0
        %1373 = vmatprep.subr.mxu0 0.0
        %1374 = vmatpush1.msra.mxu0 0.0
        %1375 = vmatprep.subr.mxu0 0.0
        %1376 = vmatpush1.msra.mxu0 0.0
        %1377 = vmatprep.subr.mxu0 0.0
        %1378 = vmatpush1.msra.mxu0 0.0
        %1379 = vmatprep.subr.mxu0 0.0
        %1380 = vmatpush1.msra.mxu0 0.0
        %1381 = vmatprep.subr.mxu0 0.0
        %1382 = vmatpush1.msra.mxu0 0.0
        %1383 = vmatprep.mubr.f32.mxu0 0.0
        %1384 = vmatmul.mubr.f32.gmra.mrb[0].mxu0 %v1237
        %v1385 = vpop.f32.mrb[0].mxu0
        %v1386 = vadd.f32 0.0, %v1385
        %v1387 = vpop.f32.mrb[0].mxu0
        %v1388 = vadd.f32 0.0, %v1387
        %1389 = vmatprep.mubr.f32.mxu0 0.0
        %1390 = vmatmul.mubr.f32.gmra.mrb[0].mxu0 %v1240
        %v1391 = vpop.f32.mrb[0].mxu0
        %v1392 = vadd.f32 0.0, %v1391
        %v1393 = vpop.f32.mrb[0].mxu0
        %v1394 = vadd.f32 0.0, %v1393
        %1395 = vdwg.mxu0
        %v1396 = vadd.f32 %v1205, %v1309
        %v1397 = vadd.f32 %v1206, %v1311
        %v1398 = vadd.f32 %v1207, %v1386
        %v1399 = vadd.f32 %v1208, %v1388
        %v1400 = vadd.f32 %v1209, %v1315
        %v1401 = vadd.f32 %v1210, %v1317
        %v1402 = vadd.f32 %v1211, %v1392
        %v1403 = vadd.f32 %v1212, %v1394
        %s1404 = scalar_lea.vmem %s1, 96
        %v1405 = vld [vmem:[%s1404] sm:$0xff]
        %v1406 = vld [vmem:[%s1404 + $0x8] sm:$0xff]
        %1407 = vrot.lane.b32.xlu0 %v288, 111
        %v1408 = vpop.permute.xlu0 %1407
        %1409 = vrot.lane.b32.xlu0 %v289, 111
        %v1410 = vpop.permute.xlu0 %1409
        %1411 = vrot.lane.b32.xlu0 %v290, 111
        %v1412 = vpop.permute.xlu0 %1411
        %1413 = vrot.lane.b32.xlu0 %v291, 111
        %v1414 = vpop.permute.xlu0 %1413
        %1415 = vrot.lane.b32.xlu0 %v292, 111
        %v1416 = vpop.permute.xlu0 %1415
        %vm1417 = vcmask 908288
        %v1418 = vsel %vm1417, %v1408, %v1410
        %v1419 = vsel %vm1417, %v1410, %v1412
        %v1420 = vsel %vm1417, %v1412, %v1414
        %v1421 = vsel %vm1417, %v1414, %v1416
        %v1427 = vsel %vm322, %v1405, 0
        %v1430 = vsel %vm322, %v1406, 0
        %1432 = vmatprep.subr.mxu0 %v1419
        %1433 = vmatpush1.msra.mxu0 %v1418
        %1434 = vmatprep.subr.mxu0 0.0
        %1435 = vmatpush1.msra.mxu0 0.0
        %1436 = vmatprep.subr.mxu0 0.0
        %1437 = vmatpush1.msra.mxu0 0.0
        %1438 = vmatprep.subr.mxu0 0.0
        %1439 = vmatpush1.msra.mxu0 0.0
        %1440 = vmatprep.subr.mxu0 0.0
        %1441 = vmatpush1.msra.mxu0 0.0
        %1442 = vmatprep.subr.mxu0 0.0
        %1443 = vmatpush1.msra.mxu0 0.0
        %1444 = vmatprep.subr.mxu0 0.0
        %1445 = vmatpush1.msra.mxu0 0.0
        %1446 = vmatprep.subr.mxu0 0.0
        %1447 = vmatpush1.msra.mxu0 0.0
        %1448 = vmatprep.subr.mxu0 0.0
        %1449 = vmatpush1.msra.mxu0 0.0
        %1450 = vmatprep.subr.mxu0 0.0
        %1451 = vmatpush1.msra.mxu0 0.0
        %1452 = vmatprep.subr.mxu0 0.0
        %1453 = vmatpush1.msra.mxu0 0.0
        %1454 = vmatprep.subr.mxu0 0.0
        %1455 = vmatpush1.msra.mxu0 0.0
        %1456 = vmatprep.subr.mxu0 0.0
        %1457 = vmatpush1.msra.mxu0 0.0
        %1458 = vmatprep.subr.mxu0 0.0
        %1459 = vmatpush1.msra.mxu0 0.0
        %1460 = vmatprep.subr.mxu0 0.0
        %1461 = vmatpush1.msra.mxu0 0.0
        %1462 = vmatprep.subr.mxu0 0.0
        %1463 = vmatpush1.msra.mxu0 0.0
        %1464 = vmatprep.subr.mxu0 0.0
        %1465 = vmatpush1.msra.mxu0 0.0
        %1466 = vmatprep.subr.mxu0 0.0
        %1467 = vmatpush1.msra.mxu0 0.0
        %1468 = vmatprep.subr.mxu0 0.0
        %1469 = vmatpush1.msra.mxu0 0.0
        %1470 = vmatprep.subr.mxu0 0.0
        %1471 = vmatpush1.msra.mxu0 0.0
        %1472 = vmatprep.subr.mxu0 0.0
        %1473 = vmatpush1.msra.mxu0 0.0
        %1474 = vmatprep.subr.mxu0 0.0
        %1475 = vmatpush1.msra.mxu0 0.0
        %1476 = vmatprep.subr.mxu0 0.0
        %1477 = vmatpush1.msra.mxu0 0.0
        %1478 = vmatprep.subr.mxu0 0.0
        %1479 = vmatpush1.msra.mxu0 0.0
        %1480 = vmatprep.subr.mxu0 0.0
        %1481 = vmatpush1.msra.mxu0 0.0
        %1482 = vmatprep.subr.mxu0 0.0
        %1483 = vmatpush1.msra.mxu0 0.0
        %1484 = vmatprep.subr.mxu0 0.0
        %1485 = vmatpush1.msra.mxu0 0.0
        %1486 = vmatprep.subr.mxu0 0.0
        %1487 = vmatpush1.msra.mxu0 0.0
        %1488 = vmatprep.subr.mxu0 0.0
        %1489 = vmatpush1.msra.mxu0 0.0
        %1490 = vmatprep.subr.mxu0 0.0
        %1491 = vmatpush1.msra.mxu0 0.0
        %1492 = vmatprep.subr.mxu0 0.0
        %1493 = vmatpush1.msra.mxu0 0.0
        %1494 = vmatprep.subr.mxu0 0.0
        %1495 = vmatpush1.msra.mxu0 0.0
        %1496 = vmatprep.mubr.f32.mxu0 0.0
        %1497 = vmatmul.mubr.f32.gmra.mrb[0].mxu0 %v1427
        %v1498 = vpop.f32.mrb[0].mxu0
        %v1499 = vadd.f32 0.0, %v1498
        %v1500 = vpop.f32.mrb[0].mxu0
        %v1501 = vadd.f32 0.0, %v1500
        %1502 = vmatprep.mubr.f32.mxu0 0.0
        %1503 = vmatmul.mubr.f32.gmra.mrb[0].mxu0 %v1430
        %v1504 = vpop.f32.mrb[0].mxu0
        %v1505 = vadd.f32 0.0, %v1504
        %v1506 = vpop.f32.mrb[0].mxu0
        %v1507 = vadd.f32 0.0, %v1506
        %1508 = vdwg.mxu0
        %1509 = vmatprep.subr.mxu0 %v1421
        %1510 = vmatpush1.msra.mxu0 %v1420
        %1511 = vmatprep.subr.mxu0 0.0
        %1512 = vmatpush1.msra.mxu0 0.0
        %1513 = vmatprep.subr.mxu0 0.0
        %1514 = vmatpush1.msra.mxu0 0.0
        %1515 = vmatprep.subr.mxu0 0.0
        %1516 = vmatpush1.msra.mxu0 0.0
        %1517 = vmatprep.subr.mxu0 0.0
        %1518 = vmatpush1.msra.mxu0 0.0
        %1519 = vmatprep.subr.mxu0 0.0
        %1520 = vmatpush1.msra.mxu0 0.0
        %1521 = vmatprep.subr.mxu0 0.0
        %1522 = vmatpush1.msra.mxu0 0.0
        %1523 = vmatprep.subr.mxu0 0.0
        %1524 = vmatpush1.msra.mxu0 0.0
        %1525 = vmatprep.subr.mxu0 0.0
        %1526 = vmatpush1.msra.mxu0 0.0
        %1527 = vmatprep.subr.mxu0 0.0
        %1528 = vmatpush1.msra.mxu0 0.0
        %1529 = vmatprep.subr.mxu0 0.0
        %1530 = vmatpush1.msra.mxu0 0.0
        %1531 = vmatprep.subr.mxu0 0.0
        %1532 = vmatpush1.msra.mxu0 0.0
        %1533 = vmatprep.subr.mxu0 0.0
        %1534 = vmatpush1.msra.mxu0 0.0
        %1535 = vmatprep.subr.mxu0 0.0
        %1536 = vmatpush1.msra.mxu0 0.0
        %1537 = vmatprep.subr.mxu0 0.0
        %1538 = vmatpush1.msra.mxu0 0.0
        %1539 = vmatprep.subr.mxu0 0.0
        %1540 = vmatpush1.msra.mxu0 0.0
        %1541 = vmatprep.subr.mxu0 0.0
        %1542 = vmatpush1.msra.mxu0 0.0
        %1543 = vmatprep.subr.mxu0 0.0
        %1544 = vmatpush1.msra.mxu0 0.0
        %1545 = vmatprep.subr.mxu0 0.0
        %1546 = vmatpush1.msra.mxu0 0.0
        %1547 = vmatprep.subr.mxu0 0.0
        %1548 = vmatpush1.msra.mxu0 0.0
        %1549 = vmatprep.subr.mxu0 0.0
        %1550 = vmatpush1.msra.mxu0 0.0
        %1551 = vmatprep.subr.mxu0 0.0
        %1552 = vmatpush1.msra.mxu0 0.0
        %1553 = vmatprep.subr.mxu0 0.0
        %1554 = vmatpush1.msra.mxu0 0.0
        %1555 = vmatprep.subr.mxu0 0.0
        %1556 = vmatpush1.msra.mxu0 0.0
        %1557 = vmatprep.subr.mxu0 0.0
        %1558 = vmatpush1.msra.mxu0 0.0
        %1559 = vmatprep.subr.mxu0 0.0
        %1560 = vmatpush1.msra.mxu0 0.0
        %1561 = vmatprep.subr.mxu0 0.0
        %1562 = vmatpush1.msra.mxu0 0.0
        %1563 = vmatprep.subr.mxu0 0.0
        %1564 = vmatpush1.msra.mxu0 0.0
        %1565 = vmatprep.subr.mxu0 0.0
        %1566 = vmatpush1.msra.mxu0 0.0
        %1567 = vmatprep.subr.mxu0 0.0
        %1568 = vmatpush1.msra.mxu0 0.0
        %1569 = vmatprep.subr.mxu0 0.0
        %1570 = vmatpush1.msra.mxu0 0.0
        %1571 = vmatprep.subr.mxu0 0.0
        %1572 = vmatpush1.msra.mxu0 0.0
        %1573 = vmatprep.mubr.f32.mxu0 0.0
        %1574 = vmatmul.mubr.f32.gmra.mrb[0].mxu0 %v1427
        %v1575 = vpop.f32.mrb[0].mxu0
        %v1576 = vadd.f32 0.0, %v1575
        %v1577 = vpop.f32.mrb[0].mxu0
        %v1578 = vadd.f32 0.0, %v1577
        %1579 = vmatprep.mubr.f32.mxu0 0.0
        %1580 = vmatmul.mubr.f32.gmra.mrb[0].mxu0 %v1430
        %v1581 = vpop.f32.mrb[0].mxu0
        %v1582 = vadd.f32 0.0, %v1581
        %v1583 = vpop.f32.mrb[0].mxu0
        %v1584 = vadd.f32 0.0, %v1583
        %1585 = vdwg.mxu0
        %v1586 = vadd.f32 %v1396, %v1499
        %v1587 = vadd.f32 %v1397, %v1501
        %v1588 = vadd.f32 %v1398, %v1576
        %v1589 = vadd.f32 %v1399, %v1578
        %v1590 = vadd.f32 %v1400, %v1505
        %v1591 = vadd.f32 %v1401, %v1507
        %v1592 = vadd.f32 %v1402, %v1582
        %v1593 = vadd.f32 %v1403, %v1584
        %s1594 = scalar_lea.vmem %s1, 112
        %v1595 = vld [vmem:[%s1594] sm:$0xff]
        %v1596 = vld [vmem:[%s1594 + $0x8] sm:$0xff]
        %1597 = vrot.lane.b32.xlu0 %v288, 110
        %v1598 = vpop.permute.xlu0 %1597
        %1599 = vrot.lane.b32.xlu0 %v289, 110
        %v1600 = vpop.permute.xlu0 %1599
        %1601 = vrot.lane.b32.xlu0 %v290, 110
        %v1602 = vpop.permute.xlu0 %1601
        %1603 = vrot.lane.b32.xlu0 %v291, 110
        %v1604 = vpop.permute.xlu0 %1603
        %1605 = vrot.lane.b32.xlu0 %v292, 110
        %v1606 = vpop.permute.xlu0 %1605
        %vm1607 = vcmask 900096
        %v1608 = vsel %vm1607, %v1598, %v1600
        %v1609 = vsel %vm1607, %v1600, %v1602
        %v1610 = vsel %vm1607, %v1602, %v1604
        %v1611 = vsel %vm1607, %v1604, %v1606
        %v1617 = vsel %vm322, %v1595, 0
        %v1620 = vsel %vm322, %v1596, 0
        %1622 = vmatprep.subr.mxu0 %v1609
        %1623 = vmatpush1.msra.mxu0 %v1608
        %1624 = vmatprep.subr.mxu0 0.0
        %1625 = vmatpush1.msra.mxu0 0.0
        %1626 = vmatprep.subr.mxu0 0.0
        %1627 = vmatpush1.msra.mxu0 0.0
        %1628 = vmatprep.subr.mxu0 0.0
        %1629 = vmatpush1.msra.mxu0 0.0
        %1630 = vmatprep.subr.mxu0 0.0
        %1631 = vmatpush1.msra.mxu0 0.0
        %1632 = vmatprep.subr.mxu0 0.0
        %1633 = vmatpush1.msra.mxu0 0.0
        %1634 = vmatprep.subr.mxu0 0.0
        %1635 = vmatpush1.msra.mxu0 0.0
        %1636 = vmatprep.subr.mxu0 0.0
        %1637 = vmatpush1.msra.mxu0 0.0
        %1638 = vmatprep.subr.mxu0 0.0
        %1639 = vmatpush1.msra.mxu0 0.0
        %1640 = vmatprep.subr.mxu0 0.0
        %1641 = vmatpush1.msra.mxu0 0.0
        %1642 = vmatprep.subr.mxu0 0.0
        %1643 = vmatpush1.msra.mxu0 0.0
        %1644 = vmatprep.subr.mxu0 0.0
        %1645 = vmatpush1.msra.mxu0 0.0
        %1646 = vmatprep.subr.mxu0 0.0
        %1647 = vmatpush1.msra.mxu0 0.0
        %1648 = vmatprep.subr.mxu0 0.0
        %1649 = vmatpush1.msra.mxu0 0.0
        %1650 = vmatprep.subr.mxu0 0.0
        %1651 = vmatpush1.msra.mxu0 0.0
        %1652 = vmatprep.subr.mxu0 0.0
        %1653 = vmatpush1.msra.mxu0 0.0
        %1654 = vmatprep.subr.mxu0 0.0
        %1655 = vmatpush1.msra.mxu0 0.0
        %1656 = vmatprep.subr.mxu0 0.0
        %1657 = vmatpush1.msra.mxu0 0.0
        %1658 = vmatprep.subr.mxu0 0.0
        %1659 = vmatpush1.msra.mxu0 0.0
        %1660 = vmatprep.subr.mxu0 0.0
        %1661 = vmatpush1.msra.mxu0 0.0
        %1662 = vmatprep.subr.mxu0 0.0
        %1663 = vmatpush1.msra.mxu0 0.0
        %1664 = vmatprep.subr.mxu0 0.0
        %1665 = vmatpush1.msra.mxu0 0.0
        %1666 = vmatprep.subr.mxu0 0.0
        %1667 = vmatpush1.msra.mxu0 0.0
        %1668 = vmatprep.subr.mxu0 0.0
        %1669 = vmatpush1.msra.mxu0 0.0
        %1670 = vmatprep.subr.mxu0 0.0
        %1671 = vmatpush1.msra.mxu0 0.0
        %1672 = vmatprep.subr.mxu0 0.0
        %1673 = vmatpush1.msra.mxu0 0.0
        %1674 = vmatprep.subr.mxu0 0.0
        %1675 = vmatpush1.msra.mxu0 0.0
        %1676 = vmatprep.subr.mxu0 0.0
        %1677 = vmatpush1.msra.mxu0 0.0
        %1678 = vmatprep.subr.mxu0 0.0
        %1679 = vmatpush1.msra.mxu0 0.0
        %1680 = vmatprep.subr.mxu0 0.0
        %1681 = vmatpush1.msra.mxu0 0.0
        %1682 = vmatprep.subr.mxu0 0.0
        %1683 = vmatpush1.msra.mxu0 0.0
        %1684 = vmatprep.subr.mxu0 0.0
        %1685 = vmatpush1.msra.mxu0 0.0
        %1686 = vmatprep.mubr.f32.mxu0 0.0
        %1687 = vmatmul.mubr.f32.gmra.mrb[0].mxu0 %v1617
        %v1688 = vpop.f32.mrb[0].mxu0
        %v1689 = vadd.f32 0.0, %v1688
        %v1690 = vpop.f32.mrb[0].mxu0
        %v1691 = vadd.f32 0.0, %v1690
        %1692 = vmatprep.mubr.f32.mxu0 0.0
        %1693 = vmatmul.mubr.f32.gmra.mrb[0].mxu0 %v1620
        %v1694 = vpop.f32.mrb[0].mxu0
        %v1695 = vadd.f32 0.0, %v1694
        %v1696 = vpop.f32.mrb[0].mxu0
        %v1697 = vadd.f32 0.0, %v1696
        %1698 = vdwg.mxu0
        %1699 = vmatprep.subr.mxu0 %v1611
        %1700 = vmatpush1.msra.mxu0 %v1610
        %1701 = vmatprep.subr.mxu0 0.0
        %1702 = vmatpush1.msra.mxu0 0.0
        %1703 = vmatprep.subr.mxu0 0.0
        %1704 = vmatpush1.msra.mxu0 0.0
        %1705 = vmatprep.subr.mxu0 0.0
        %1706 = vmatpush1.msra.mxu0 0.0
        %1707 = vmatprep.subr.mxu0 0.0
        %1708 = vmatpush1.msra.mxu0 0.0
        %1709 = vmatprep.subr.mxu0 0.0
        %1710 = vmatpush1.msra.mxu0 0.0
        %1711 = vmatprep.subr.mxu0 0.0
        %1712 = vmatpush1.msra.mxu0 0.0
        %1713 = vmatprep.subr.mxu0 0.0
        %1714 = vmatpush1.msra.mxu0 0.0
        %1715 = vmatprep.subr.mxu0 0.0
        %1716 = vmatpush1.msra.mxu0 0.0
        %1717 = vmatprep.subr.mxu0 0.0
        %1718 = vmatpush1.msra.mxu0 0.0
        %1719 = vmatprep.subr.mxu0 0.0
        %1720 = vmatpush1.msra.mxu0 0.0
        %1721 = vmatprep.subr.mxu0 0.0
        %1722 = vmatpush1.msra.mxu0 0.0
        %1723 = vmatprep.subr.mxu0 0.0
        %1724 = vmatpush1.msra.mxu0 0.0
        %1725 = vmatprep.subr.mxu0 0.0
        %1726 = vmatpush1.msra.mxu0 0.0
        %1727 = vmatprep.subr.mxu0 0.0
        %1728 = vmatpush1.msra.mxu0 0.0
        %1729 = vmatprep.subr.mxu0 0.0
        %1730 = vmatpush1.msra.mxu0 0.0
        %1731 = vmatprep.subr.mxu0 0.0
        %1732 = vmatpush1.msra.mxu0 0.0
        %1733 = vmatprep.subr.mxu0 0.0
        %1734 = vmatpush1.msra.mxu0 0.0
        %1735 = vmatprep.subr.mxu0 0.0
        %1736 = vmatpush1.msra.mxu0 0.0
        %1737 = vmatprep.subr.mxu0 0.0
        %1738 = vmatpush1.msra.mxu0 0.0
        %1739 = vmatprep.subr.mxu0 0.0
        %1740 = vmatpush1.msra.mxu0 0.0
        %1741 = vmatprep.subr.mxu0 0.0
        %1742 = vmatpush1.msra.mxu0 0.0
        %1743 = vmatprep.subr.mxu0 0.0
        %1744 = vmatpush1.msra.mxu0 0.0
        %1745 = vmatprep.subr.mxu0 0.0
        %1746 = vmatpush1.msra.mxu0 0.0
        %1747 = vmatprep.subr.mxu0 0.0
        %1748 = vmatpush1.msra.mxu0 0.0
        %1749 = vmatprep.subr.mxu0 0.0
        %1750 = vmatpush1.msra.mxu0 0.0
        %1751 = vmatprep.subr.mxu0 0.0
        %1752 = vmatpush1.msra.mxu0 0.0
        %1753 = vmatprep.subr.mxu0 0.0
        %1754 = vmatpush1.msra.mxu0 0.0
        %1755 = vmatprep.subr.mxu0 0.0
        %1756 = vmatpush1.msra.mxu0 0.0
        %1757 = vmatprep.subr.mxu0 0.0
        %1758 = vmatpush1.msra.mxu0 0.0
        %1759 = vmatprep.subr.mxu0 0.0
        %1760 = vmatpush1.msra.mxu0 0.0
        %1761 = vmatprep.subr.mxu0 0.0
        %1762 = vmatpush1.msra.mxu0 0.0
        %1763 = vmatprep.mubr.f32.mxu0 0.0
        %1764 = vmatmul.mubr.f32.gmra.mrb[0].mxu0 %v1617
        %v1765 = vpop.f32.mrb[0].mxu0
        %v1766 = vadd.f32 0.0, %v1765
        %v1767 = vpop.f32.mrb[0].mxu0
        %v1768 = vadd.f32 0.0, %v1767
        %1769 = vmatprep.mubr.f32.mxu0 0.0
        %1770 = vmatmul.mubr.f32.gmra.mrb[0].mxu0 %v1620
        %v1771 = vpop.f32.mrb[0].mxu0
        %v1772 = vadd.f32 0.0, %v1771
        %v1773 = vpop.f32.mrb[0].mxu0
        %v1774 = vadd.f32 0.0, %v1773
        %1775 = vdwg.mxu0
        %v1776 = vadd.f32 %v1586, %v1689
        %v1777 = vadd.f32 %v1587, %v1691
        %v1778 = vadd.f32 %v1588, %v1766
        %v1779 = vadd.f32 %v1589, %v1768
        %v1780 = vadd.f32 %v1590, %v1695
        %v1781 = vadd.f32 %v1591, %v1697
        %v1782 = vadd.f32 %v1592, %v1772
        %v1783 = vadd.f32 %v1593, %v1774
        %s1784 = scalar_lea.vmem %s1, 128
        %v1785 = vld [vmem:[%s1784] sm:$0xff]
        %v1786 = vld [vmem:[%s1784 + $0x8] sm:$0xff]
        %1787 = vrot.lane.b32.xlu0 %v288, 109
        %v1788 = vpop.permute.xlu0 %1787
        %1789 = vrot.lane.b32.xlu0 %v289, 109
        %v1790 = vpop.permute.xlu0 %1789
        %1791 = vrot.lane.b32.xlu0 %v290, 109
        %v1792 = vpop.permute.xlu0 %1791
        %1793 = vrot.lane.b32.xlu0 %v291, 109
        %v1794 = vpop.permute.xlu0 %1793
        %1795 = vrot.lane.b32.xlu0 %v292, 109
        %v1796 = vpop.permute.xlu0 %1795
        %vm1797 = vcmask 891904
        %v1798 = vsel %vm1797, %v1788, %v1790
        %v1799 = vsel %vm1797, %v1790, %v1792
        %v1800 = vsel %vm1797, %v1792, %v1794
        %v1801 = vsel %vm1797, %v1794, %v1796
        %v1807 = vsel %vm322, %v1785, 0
        %v1810 = vsel %vm322, %v1786, 0
        %1812 = vmatprep.subr.mxu0 %v1799
        %1813 = vmatpush1.msra.mxu0 %v1798
        %1814 = vmatprep.subr.mxu0 0.0
        %1815 = vmatpush1.msra.mxu0 0.0
        %1816 = vmatprep.subr.mxu0 0.0
        %1817 = vmatpush1.msra.mxu0 0.0
        %1818 = vmatprep.subr.mxu0 0.0
        %1819 = vmatpush1.msra.mxu0 0.0
        %1820 = vmatprep.subr.mxu0 0.0
        %1821 = vmatpush1.msra.mxu0 0.0
        %1822 = vmatprep.subr.mxu0 0.0
        %1823 = vmatpush1.msra.mxu0 0.0
        %1824 = vmatprep.subr.mxu0 0.0
        %1825 = vmatpush1.msra.mxu0 0.0
        %1826 = vmatprep.subr.mxu0 0.0
        %1827 = vmatpush1.msra.mxu0 0.0
        %1828 = vmatprep.subr.mxu0 0.0
        %1829 = vmatpush1.msra.mxu0 0.0
        %1830 = vmatprep.subr.mxu0 0.0
        %1831 = vmatpush1.msra.mxu0 0.0
        %1832 = vmatprep.subr.mxu0 0.0
        %1833 = vmatpush1.msra.mxu0 0.0
        %1834 = vmatprep.subr.mxu0 0.0
        %1835 = vmatpush1.msra.mxu0 0.0
        %1836 = vmatprep.subr.mxu0 0.0
        %1837 = vmatpush1.msra.mxu0 0.0
        %1838 = vmatprep.subr.mxu0 0.0
        %1839 = vmatpush1.msra.mxu0 0.0
        %1840 = vmatprep.subr.mxu0 0.0
        %1841 = vmatpush1.msra.mxu0 0.0
        %1842 = vmatprep.subr.mxu0 0.0
        %1843 = vmatpush1.msra.mxu0 0.0
        %1844 = vmatprep.subr.mxu0 0.0
        %1845 = vmatpush1.msra.mxu0 0.0
        %1846 = vmatprep.subr.mxu0 0.0
        %1847 = vmatpush1.msra.mxu0 0.0
        %1848 = vmatprep.subr.mxu0 0.0
        %1849 = vmatpush1.msra.mxu0 0.0
        %1850 = vmatprep.subr.mxu0 0.0
        %1851 = vmatpush1.msra.mxu0 0.0
        %1852 = vmatprep.subr.mxu0 0.0
        %1853 = vmatpush1.msra.mxu0 0.0
        %1854 = vmatprep.subr.mxu0 0.0
        %1855 = vmatpush1.msra.mxu0 0.0
        %1856 = vmatprep.subr.mxu0 0.0
        %1857 = vmatpush1.msra.mxu0 0.0
        %1858 = vmatprep.subr.mxu0 0.0
        %1859 = vmatpush1.msra.mxu0 0.0
        %1860 = vmatprep.subr.mxu0 0.0
        %1861 = vmatpush1.msra.mxu0 0.0
        %1862 = vmatprep.subr.mxu0 0.0
        %1863 = vmatpush1.msra.mxu0 0.0
        %1864 = vmatprep.subr.mxu0 0.0
        %1865 = vmatpush1.msra.mxu0 0.0
        %1866 = vmatprep.subr.mxu0 0.0
        %1867 = vmatpush1.msra.mxu0 0.0
        %1868 = vmatprep.subr.mxu0 0.0
        %1869 = vmatpush1.msra.mxu0 0.0
        %1870 = vmatprep.subr.mxu0 0.0
        %1871 = vmatpush1.msra.mxu0 0.0
        %1872 = vmatprep.subr.mxu0 0.0
        %1873 = vmatpush1.msra.mxu0 0.0
        %1874 = vmatprep.subr.mxu0 0.0
        %1875 = vmatpush1.msra.mxu0 0.0
        %1876 = vmatprep.mubr.f32.mxu0 0.0
        %1877 = vmatmul.mubr.f32.gmra.mrb[0].mxu0 %v1807
        %v1878 = vpop.f32.mrb[0].mxu0
        %v1879 = vadd.f32 0.0, %v1878
        %v1880 = vpop.f32.mrb[0].mxu0
        %v1881 = vadd.f32 0.0, %v1880
        %1882 = vmatprep.mubr.f32.mxu0 0.0
        %1883 = vmatmul.mubr.f32.gmra.mrb[0].mxu0 %v1810
        %v1884 = vpop.f32.mrb[0].mxu0
        %v1885 = vadd.f32 0.0, %v1884
        %v1886 = vpop.f32.mrb[0].mxu0
        %v1887 = vadd.f32 0.0, %v1886
        %1888 = vdwg.mxu0
        %1889 = vmatprep.subr.mxu0 %v1801
        %1890 = vmatpush1.msra.mxu0 %v1800
        %1891 = vmatprep.subr.mxu0 0.0
        %1892 = vmatpush1.msra.mxu0 0.0
        %1893 = vmatprep.subr.mxu0 0.0
        %1894 = vmatpush1.msra.mxu0 0.0
        %1895 = vmatprep.subr.mxu0 0.0
        %1896 = vmatpush1.msra.mxu0 0.0
        %1897 = vmatprep.subr.mxu0 0.0
        %1898 = vmatpush1.msra.mxu0 0.0
        %1899 = vmatprep.subr.mxu0 0.0
        %1900 = vmatpush1.msra.mxu0 0.0
        %1901 = vmatprep.subr.mxu0 0.0
        %1902 = vmatpush1.msra.mxu0 0.0
        %1903 = vmatprep.subr.mxu0 0.0
        %1904 = vmatpush1.msra.mxu0 0.0
        %1905 = vmatprep.subr.mxu0 0.0
        %1906 = vmatpush1.msra.mxu0 0.0
        %1907 = vmatprep.subr.mxu0 0.0
        %1908 = vmatpush1.msra.mxu0 0.0
        %1909 = vmatprep.subr.mxu0 0.0
        %1910 = vmatpush1.msra.mxu0 0.0
        %1911 = vmatprep.subr.mxu0 0.0
        %1912 = vmatpush1.msra.mxu0 0.0
        %1913 = vmatprep.subr.mxu0 0.0
        %1914 = vmatpush1.msra.mxu0 0.0
        %1915 = vmatprep.subr.mxu0 0.0
        %1916 = vmatpush1.msra.mxu0 0.0
        %1917 = vmatprep.subr.mxu0 0.0
        %1918 = vmatpush1.msra.mxu0 0.0
        %1919 = vmatprep.subr.mxu0 0.0
        %1920 = vmatpush1.msra.mxu0 0.0
        %1921 = vmatprep.subr.mxu0 0.0
        %1922 = vmatpush1.msra.mxu0 0.0
        %1923 = vmatprep.subr.mxu0 0.0
        %1924 = vmatpush1.msra.mxu0 0.0
        %1925 = vmatprep.subr.mxu0 0.0
        %1926 = vmatpush1.msra.mxu0 0.0
        %1927 = vmatprep.subr.mxu0 0.0
        %1928 = vmatpush1.msra.mxu0 0.0
        %1929 = vmatprep.subr.mxu0 0.0
        %1930 = vmatpush1.msra.mxu0 0.0
        %1931 = vmatprep.subr.mxu0 0.0
        %1932 = vmatpush1.msra.mxu0 0.0
        %1933 = vmatprep.subr.mxu0 0.0
        %1934 = vmatpush1.msra.mxu0 0.0
        %1935 = vmatprep.subr.mxu0 0.0
        %1936 = vmatpush1.msra.mxu0 0.0
        %1937 = vmatprep.subr.mxu0 0.0
        %1938 = vmatpush1.msra.mxu0 0.0
        %1939 = vmatprep.subr.mxu0 0.0
        %1940 = vmatpush1.msra.mxu0 0.0
        %1941 = vmatprep.subr.mxu0 0.0
        %1942 = vmatpush1.msra.mxu0 0.0
        %1943 = vmatprep.subr.mxu0 0.0
        %1944 = vmatpush1.msra.mxu0 0.0
        %1945 = vmatprep.subr.mxu0 0.0
        %1946 = vmatpush1.msra.mxu0 0.0
        %1947 = vmatprep.subr.mxu0 0.0
        %1948 = vmatpush1.msra.mxu0 0.0
        %1949 = vmatprep.subr.mxu0 0.0
        %1950 = vmatpush1.msra.mxu0 0.0
        %1951 = vmatprep.subr.mxu0 0.0
        %1952 = vmatpush1.msra.mxu0 0.0
        %1953 = vmatprep.mubr.f32.mxu0 0.0
        %1954 = vmatmul.mubr.f32.gmra.mrb[0].mxu0 %v1807
        %v1955 = vpop.f32.mrb[0].mxu0
        %v1956 = vadd.f32 0.0, %v1955
        %v1957 = vpop.f32.mrb[0].mxu0
        %v1958 = vadd.f32 0.0, %v1957
        %1959 = vmatprep.mubr.f32.mxu0 0.0
        %1960 = vmatmul.mubr.f32.gmra.mrb[0].mxu0 %v1810
        %v1961 = vpop.f32.mrb[0].mxu0
        %v1962 = vadd.f32 0.0, %v1961
        %v1963 = vpop.f32.mrb[0].mxu0
        %v1964 = vadd.f32 0.0, %v1963
        %1965 = vdwg.mxu0
        %v1966 = vadd.f32 %v1776, %v1879
        %v1967 = vadd.f32 %v1777, %v1881
        %v1968 = vadd.f32 %v1778, %v1956
        %v1969 = vadd.f32 %v1779, %v1958
        %v1970 = vadd.f32 %v1780, %v1885
        %v1971 = vadd.f32 %v1781, %v1887
        %v1972 = vadd.f32 %v1782, %v1962
        %v1973 = vadd.f32 %v1783, %v1964
        %v1974 = vld [vmem:[%s2] sm:$0xff]
        %1976 = vset.pattern.permute.xlu0 0
        %1977 = vperm.xlu0 %1976, %v1974
        %v1978 = vpop.permute.xlu0 %1977
        %v1980 = vadd.f32 %v1966, %v1978
        %v1981 = vadd.f32 %v1967, %v1978
        %v1982 = vadd.f32 %v1968, %v1978
        %v1983 = vadd.f32 %v1969, %v1978
        %v1984 = vld [vmem:[%s2 + $0x8] sm:$0xff]
        %1986 = vset.pattern.permute.xlu0 0
        %1987 = vperm.xlu0 %1986, %v1984
        %v1988 = vpop.permute.xlu0 %1987
        %v1990 = vadd.f32 %v1970, %v1988
        %v1991 = vadd.f32 %v1971, %v1988
        %v1992 = vadd.f32 %v1972, %v1988
        %v1993 = vadd.f32 %v1973, %v1988
        %v1994 = vxor.u32 %v1990, 2147483648
        %v1995 = vxor.u32 %v1991, 2147483648
        %v1996 = vxor.u32 %v1992, 2147483648
        %v1997 = vxor.u32 %v1993, 2147483648
        %v1998 = vmul.f32 %v1994, 1.442695
        %v1999 = vpow.pop %v1998
        %v2000 = vmul.f32 %v1995, 1.442695
        %v2001 = vpow.pop %v2000
        %v2002 = vmul.f32 %v1996, 1.442695
        %v2003 = vpow.pop %v2002
        %v2004 = vmul.f32 %v1997, 1.442695
        %v2005 = vpow.pop %v2004
        %v2006 = vadd.f32 %v1999, 1.0
        %v2007 = vadd.f32 %v2001, 1.0
        %v2008 = vadd.f32 %v2003, 1.0
        %v2009 = vadd.f32 %v2005, 1.0
        %v2010 = vrcp.pop %v2006
        %v2011 = vmul.f32 1.0, %v2010
        %v2012 = vrcp.pop %v2007
        %v2013 = vmul.f32 1.0, %v2012
        %v2014 = vrcp.pop %v2008
        %v2015 = vmul.f32 1.0, %v2014
        %v2016 = vrcp.pop %v2009
        %v2017 = vmul.f32 1.0, %v2016
        %v2018 = vmul.f32 %v1980, %v2011
        %v2019 = vmul.f32 %v1981, %v2013
        %v2020 = vmul.f32 %v1982, %v2015
        %v2021 = vmul.f32 %v1983, %v2017
        %2022 = vst [vmem:[%s136] sm:$0xff] %v2018
        %2023 = vst [vmem:[%s136 + $0x8] sm:$0xff] %v2019
        %2024 = vst [vmem:[%s136 + $0x10] sm:$0xff] %v2020
        %2025 = vst [vmem:[%s136 + $0x18] sm:$0xff] %v2021
        %s2026 = sand.u32 %s81, 1
        %s2027 = scalar_lea.sflag [#allocation5], %s2026
        %s2028 = sand.u32 %s81, 1
        %s2029 = smul.addr %s2028, 32
        %s2030 = scalar_lea.vmem [#allocation4], %s2029
        // Predicated region
        $region105: #{tpu_custom_call.1} parent=27 // pred_check
          %p2031 = pneg %p91
        $region106: #{tpu_custom_call.1} parent=27 // pred_check_branch
          %2033 = sbr.rel (%p2031) target = $region108
        $region107: #{tpu_custom_call.1} parent=27 // pred_region
          %s2034 = sadd.s32 %s21, %s22
          %s2035 = smul.u32 4, %s2034
          %s2037 = ssub.s32 512, 512
          %2038 = vsyncadd %s2027, %s2037
          %s2039 = smul.addr %s2035, 128
          %s2040 = scalar_lea.hbm %s3, %s2039
          %s2042 = sshll.u32 %s2030, 4
          %s2043 = int_to_ptr.vmem [resolvable:$true] %s2042
          %2045 = dma.vmem_to_hbm [thread:$0]  %s2043, 512, %s2040, %s2027
        $region108: #{tpu_custom_call.1} parent=27 // pred_fallthru
          _
      $region28: #{tpu_custom_call.1} parent=5 // pred_fallthru
        _
      %p2046 = scmp.le.s32.totalorder 2, %s12
      // Predicated region
      $region109: #{tpu_custom_call.1} parent=5 // pred_check
        %p2047 = pneg %p2046
      $region110: #{tpu_custom_call.1} parent=5 // pred_check_branch
        %2049 = sbr.rel (%p2047) target = $region112
      $region111: #{tpu_custom_call.1} parent=5 // pred_region
        %s2050 = ssub.s32 %s12, 2
        // Predicated region
        $region113: #{tpu_custom_call.1} parent=111 // pred_check
          %p2051 = pneg %p97
        $region114: #{tpu_custom_call.1} parent=111 // pred_check_branch
          %2053 = sbr.rel (%p2051) target = $region116
        $region115: #{tpu_custom_call.1} parent=111 // pred_region
          %s2054 = sand.u32 %s82, 1
          %s2055 = scalar_lea.sflag [#allocation5], %s2054
          %s2056 = sand.u32 %s82, 1
          %s2057 = smul.addr %s2056, 32
          %s2058 = scalar_lea.vmem [#allocation4], %s2057
          %2059 = dma.done %s2055, 512
        $region116: #{tpu_custom_call.1} parent=111 // pred_fallthru
          _
      $region112: #{tpu_custom_call.1} parent=5 // pred_fallthru
        _
    $region6: #{tpu_custom_call.1} parent=1 // loop_footer
      %s16 = sadd.s32 1, %s12
    $region7: #{tpu_custom_call.1} parent=1 // loop_footer_branch
      %11 = sbr.rel target = $region3
    $region8: #{tpu_custom_call.1} parent=1 // loop_exit
      _
    %2060 = vsyncpa [#allocation5], 1
    %s2061 = scalar_lea.sflag [#allocation5], 1
    %2062 = vsyncpa %s2061, 1
  %2063 = vsyncmov [#allocation3]
  %s2064 = vpop.sfrf %2063
  %p2065 = scmp.eq.s32.totalorder %s2064, 0
  %p2066 = pneg %p2065
  %2068 = shalt.err (%p2066)
  %s2069 = scalar_lea.sflag [#allocation3], 1
  %2070 = vsyncmov %s2069
  %s2071 = vpop.sfrf %2070
  %p2072 = scmp.eq.s32.totalorder %s2071, 0
  %p2073 = pneg %p2072
  %2075 = shalt.err (%p2073)

</llo_original>
